<compile_context>
chip_gen: v7x
topology: tpu7x:2x2x1
jax: 0.10.0
libtpu: 0.0.40
codegen_flags: <defaults>
</compile_context>

<pallas_src>
import jax
import jax.numpy as jnp
from jax.experimental import pallas as pl
from jax.experimental.pallas import tpu as pltpu


def _round_up(a, b):
    return ((a + b - 1) // b) * b


# Cody-Waite split of pi/2 (cephes single-precision constants; short mantissas
# so kf * PIO2_A is exact for the |z| range produced by a Fourier-feature map).
_TWO_OVER_PI = 0.6366197723675814
_PIO2_A = 1.5703125
_PIO2_B = 4.837512969970703125e-04
_PIO2_C = 7.549789948768648e-08

# cephes f32 minimax polynomial coefficients, valid for |r| <= pi/4.
_S1, _S2, _S3 = -1.6666654611e-1, 8.3321608736e-3, -1.9515295891e-4
_C1, _C2, _C3 = 4.166664568298827e-2, -1.388731625493765e-3, 2.443315711809948e-5


def _gff_kernel(x_ref, bq_ref, o_ref):
    # x_ref:  (tm, n_vars)        coordinate tile
    # bq_ref: (n_vars+1, 2*M)     rows 0..n_vars-1 = [B | B],
    #                             row  n_vars      = quadrant offset [0.. | 1..]
    # o_ref:  (tm, 2*M)           final output tile [sin(xB) | cos(xB)]
    n_vars = x_ref.shape[1]
    xv = x_ref[...].astype(jnp.float32)
    bq = bq_ref[...].astype(jnp.float32)
    qoff = bq[n_vars:n_vars + 1, :]                    # (1, 2M), 0.0 or 1.0

    # z = x @ [B | B]   (K = n_vars is tiny: VPU outer-product accumulation)
    z = xv[:, 0:1] * bq[0:1, :]
    for k in range(1, n_vars):
        z = z + xv[:, k:k + 1] * bq[k:k + 1, :]

    # Shared range reduction: z = kf*(pi/2) + r,  |r| <= pi/4.
    kf = jnp.floor(z * _TWO_OVER_PI + 0.5)
    r = z - kf * _PIO2_A
    r = r - kf * _PIO2_B
    r = r - kf * _PIO2_C
    # Quadrant: +1 on the cos half -> cos(z) = sin(z + pi/2) with no phase error.
    q = (kf + qoff).astype(jnp.int32) & 3

    rr = r * r
    sin_r = r + r * rr * (_S1 + rr * (_S2 + rr * _S3))
    cos_r = 1.0 - 0.5 * rr + rr * rr * (_C1 + rr * (_C2 + rr * _C3))

    val = jnp.where((q & 1) == 1, cos_r, sin_r)
    val = jnp.where((q & 2) != 0, -val, val)
    o_ref[...] = val.astype(o_ref.dtype)


def gaus_fourier_map(x, B, *, tm=None, out_dtype=jnp.float32):
    """x: (N, n_vars), B: (n_vars, M) -> (N, 2*M) = [sin(x@B) | cos(x@B)]."""
    N, n_vars = x.shape
    n_vars_b, M = B.shape
    assert n_vars == n_vars_b
    F = 2 * M

    # Prepared matrix: [B | B] plus a quadrant-offset row (tiny: (n_vars+1, 2M)).
    bb = jnp.concatenate([B, B], axis=1).astype(jnp.float32)
    qoff = jnp.concatenate(
        [jnp.zeros((1, M), jnp.float32), jnp.ones((1, M), jnp.float32)], axis=1)
    bq = jnp.concatenate([bb, qoff], axis=0)           # (n_vars+1, 2M)

    # Batch tile: biggest that comfortably fits VMEM (double-buffered x/out tiles
    # plus a handful of f32 compute temporaries, all lane-padded).
    if tm is None:
        Fp = max(128, _round_up(F, 128))
        bytes_per_row = (2 * 128 * 4            # double-buffered x tile (lane-padded)
                         + 2 * Fp * 4           # double-buffered output tile
                         + 6 * Fp * 4)          # live f32 temporaries in the body
        tm = (28 * 1024 * 1024) // max(bytes_per_row, 1)
        tm = min(2048, tm)
    tm = max(8, min(tm, _round_up(N, 8)))
    tm = (tm // 8) * 8
    grid = (pl.cdiv(N, tm),)                    # partial final block handled by Pallas

    out = pl.pallas_call(
        _gff_kernel,
        out_shape=jax.ShapeDtypeStruct((N, F), out_dtype),
        grid_spec=pltpu.PrefetchScalarGridSpec(
            num_scalar_prefetch=0,
            grid=grid,
            in_specs=[
                pl.BlockSpec((tm, n_vars), lambda i: (i, 0)),        # x tile
                pl.BlockSpec((n_vars + 1, F), lambda i: (0, 0)),     # [B|B]+qoff (resident)
            ],
            out_specs=pl.BlockSpec((tm, F), lambda i: (i, 0)),
        ),
        compiler_params=pltpu.CompilerParams(
            dimension_semantics=("parallel",),
            vmem_limit_bytes=48 * 1024 * 1024,
        ),
        cost_estimate=pl.CostEstimate(
            flops=N * F * (2 * n_vars + 32),
            transcendentals=N * F,
            bytes_accessed=4 * (N * n_vars + (n_vars + 1) * F + N * F),
        ),
    )(x.astype(jnp.float32), bq)
    return out


if __name__ == "__main__":
    # PyTorch module defaults: N_vars=2, mapping=100, sigma=5.
    N_vars, mapping, sigma = 2, 100, 5.0
    batch = 300   # not a multiple of the tile -> exercises the partial final block

    key = jax.random.PRNGKey(0)
    k_b, k_x = jax.random.split(key)

    # Deterministic init matching torch.empty(...).normal_(0, sigma)
    B = sigma * jax.random.normal(k_b, (N_vars, mapping), dtype=jnp.float32)
    x = jax.random.normal(k_x, (batch, N_vars), dtype=jnp.float32)

    # Small explicit tile so the test runs a multi-step grid + ragged last block.
    out = jax.block_until_ready(gaus_fourier_map(x, B, tm=128))

    # Pure-JAX reference (explicit f32 contraction so the TPU matmul default
    # precision cannot pollute the reference).
    z_ref = jnp.sum(x[:, :, None] * B[None, :, :], axis=1)
    ref = jnp.concatenate([jnp.sin(z_ref), jnp.cos(z_ref)], axis=1)

    assert out.shape == (batch, 2 * mapping)
    err = float(jnp.max(jnp.abs(out - ref)))
    assert jnp.allclose(out, ref, atol=5e-5, rtol=1e-5), f"max abs err {err}"
    print("KERNEL_OK")
</pallas_src>

<mosaic_0001>
module attributes {stable_mosaic.version = 11 : i64} {
  func.func @_gff_kernel(%arg0: i32, %arg1: memref<128x2xf32, #tpu.memory_space<vmem>>, %arg2: memref<3x200xf32, #tpu.memory_space<vmem>>, %arg3: memref<128x200xf32, #tpu.memory_space<vmem>>) attributes {dimension_semantics = [#tpu.dimension_semantics<parallel>], iteration_bounds = array<i64: 3>, scalar_prefetch = 0 : i64, scratch_operands = 0 : i64, tpu.core_type = #tpu.core_type<tc>, window_params = [{transform_indices = @transform_0, window_bounds = array<i64: 128, 2>}, {pipeline_mode = #tpu.pipeline_mode<synchronous>, transform_indices = @transform_1, window_bounds = array<i64: 3, 200>}, {transform_indices = @transform_2, window_bounds = array<i64: 128, 200>}]} {
    %c0 = arith.constant 0 : index
    %c0_0 = arith.constant 0 : index
    %0 = vector.load %arg1[%c0, %c0_0] : memref<128x2xf32, #tpu.memory_space<vmem>>, vector<128x2xf32>
    %c0_1 = arith.constant 0 : index
    %c0_2 = arith.constant 0 : index
    %1 = vector.load %arg2[%c0_1, %c0_2] : memref<3x200xf32, #tpu.memory_space<vmem>>, vector<3x200xf32>
    %2 = vector.extract_strided_slice %1 {offsets = [2, 0], sizes = [1, 200], strides = [1, 1]} : vector<3x200xf32> to vector<1x200xf32>
    %3 = vector.extract_strided_slice %0 {offsets = [0, 0], sizes = [128, 1], strides = [1, 1]} : vector<128x2xf32> to vector<128x1xf32>
    %4 = vector.extract_strided_slice %1 {offsets = [0, 0], sizes = [1, 200], strides = [1, 1]} : vector<3x200xf32> to vector<1x200xf32>
    %5 = vector.broadcast %3 : vector<128x1xf32> to vector<128x200xf32>
    %6 = vector.broadcast %4 : vector<1x200xf32> to vector<128x200xf32>
    %7 = arith.mulf %5, %6 : vector<128x200xf32>
    %8 = vector.extract_strided_slice %0 {offsets = [0, 1], sizes = [128, 1], strides = [1, 1]} : vector<128x2xf32> to vector<128x1xf32>
    %9 = vector.extract_strided_slice %1 {offsets = [1, 0], sizes = [1, 200], strides = [1, 1]} : vector<3x200xf32> to vector<1x200xf32>
    %10 = vector.broadcast %8 : vector<128x1xf32> to vector<128x200xf32>
    %11 = vector.broadcast %9 : vector<1x200xf32> to vector<128x200xf32>
    %12 = arith.mulf %10, %11 : vector<128x200xf32>
    %13 = arith.addf %7, %12 : vector<128x200xf32>
    %cst = arith.constant 0.636619746 : f32
    %14 = vector.broadcast %cst : f32 to vector<128x200xf32>
    %15 = arith.mulf %13, %14 : vector<128x200xf32>
    %cst_3 = arith.constant 5.000000e-01 : f32
    %16 = vector.broadcast %cst_3 : f32 to vector<128x200xf32>
    %17 = arith.addf %15, %16 : vector<128x200xf32>
    %18 = math.floor %17 : vector<128x200xf32>
    %cst_4 = arith.constant 1.5703125 : f32
    %19 = vector.broadcast %cst_4 : f32 to vector<128x200xf32>
    %20 = arith.mulf %18, %19 : vector<128x200xf32>
    %21 = arith.subf %13, %20 : vector<128x200xf32>
    %cst_5 = arith.constant 4.83751297E-4 : f32
    %22 = vector.broadcast %cst_5 : f32 to vector<128x200xf32>
    %23 = arith.mulf %18, %22 : vector<128x200xf32>
    %24 = arith.subf %21, %23 : vector<128x200xf32>
    %cst_6 = arith.constant 7.549790e-08 : f32
    %25 = vector.broadcast %cst_6 : f32 to vector<128x200xf32>
    %26 = arith.mulf %18, %25 : vector<128x200xf32>
    %27 = arith.subf %24, %26 : vector<128x200xf32>
    %28 = vector.broadcast %2 : vector<1x200xf32> to vector<128x200xf32>
    %29 = arith.addf %18, %28 : vector<128x200xf32>
    %30 = arith.fptosi %29 : vector<128x200xf32> to vector<128x200xi32>
    %c3_i32 = arith.constant 3 : i32
    %31 = vector.broadcast %c3_i32 : i32 to vector<128x200xi32>
    %32 = arith.andi %30, %31 : vector<128x200xi32>
    %33 = arith.mulf %27, %27 : vector<128x200xf32>
    %34 = arith.mulf %27, %33 : vector<128x200xf32>
    %cst_7 = arith.constant -1.95152956E-4 : f32
    %35 = vector.broadcast %cst_7 : f32 to vector<128x200xf32>
    %36 = arith.mulf %33, %35 : vector<128x200xf32>
    %cst_8 = arith.constant 0.00833216123 : f32
    %37 = vector.broadcast %cst_8 : f32 to vector<128x200xf32>
    %38 = arith.addf %37, %36 : vector<128x200xf32>
    %39 = arith.mulf %33, %38 : vector<128x200xf32>
    %cst_9 = arith.constant -0.166666552 : f32
    %40 = vector.broadcast %cst_9 : f32 to vector<128x200xf32>
    %41 = arith.addf %40, %39 : vector<128x200xf32>
    %42 = arith.mulf %34, %41 : vector<128x200xf32>
    %43 = arith.addf %27, %42 : vector<128x200xf32>
    %cst_10 = arith.constant 5.000000e-01 : f32
    %44 = vector.broadcast %cst_10 : f32 to vector<128x200xf32>
    %45 = arith.mulf %44, %33 : vector<128x200xf32>
    %cst_11 = arith.constant 1.000000e+00 : f32
    %46 = vector.broadcast %cst_11 : f32 to vector<128x200xf32>
    %47 = arith.subf %46, %45 : vector<128x200xf32>
    %48 = arith.mulf %33, %33 : vector<128x200xf32>
    %cst_12 = arith.constant 2.44331568E-5 : f32
    %49 = vector.broadcast %cst_12 : f32 to vector<128x200xf32>
    %50 = arith.mulf %33, %49 : vector<128x200xf32>
    %cst_13 = arith.constant -0.00138873165 : f32
    %51 = vector.broadcast %cst_13 : f32 to vector<128x200xf32>
    %52 = arith.addf %51, %50 : vector<128x200xf32>
    %53 = arith.mulf %33, %52 : vector<128x200xf32>
    %cst_14 = arith.constant 0.0416666456 : f32
    %54 = vector.broadcast %cst_14 : f32 to vector<128x200xf32>
    %55 = arith.addf %54, %53 : vector<128x200xf32>
    %56 = arith.mulf %48, %55 : vector<128x200xf32>
    %57 = arith.addf %47, %56 : vector<128x200xf32>
    %c1_i32 = arith.constant 1 : i32
    %58 = vector.broadcast %c1_i32 : i32 to vector<128x200xi32>
    %59 = arith.andi %32, %58 : vector<128x200xi32>
    %c1_i32_15 = arith.constant 1 : i32
    %60 = vector.broadcast %c1_i32_15 : i32 to vector<128x200xi32>
    %61 = arith.cmpi eq, %59, %60 : vector<128x200xi32>
    %62 = arith.select %61, %57, %43 : vector<128x200xi1>, vector<128x200xf32>
    %c2_i32 = arith.constant 2 : i32
    %63 = vector.broadcast %c2_i32 : i32 to vector<128x200xi32>
    %64 = arith.andi %32, %63 : vector<128x200xi32>
    %c0_i32 = arith.constant 0 : i32
    %65 = vector.broadcast %c0_i32 : i32 to vector<128x200xi32>
    %66 = arith.cmpi ne, %64, %65 : vector<128x200xi32>
    %cst_16 = arith.constant 0.000000e+00 : f32
    %67 = vector.broadcast %cst_16 : f32 to vector<128x200xf32>
    %68 = arith.subf %67, %62 : vector<128x200xf32>
    %69 = arith.select %66, %68, %62 : vector<128x200xi1>, vector<128x200xf32>
    %c0_17 = arith.constant 0 : index
    %c0_18 = arith.constant 0 : index
    %70 = vector.load %arg3[%c0_17, %c0_18] : memref<128x200xf32, #tpu.memory_space<vmem>>, vector<128x200xf32>
    tpu.vector_store %arg3[%c0_17, %c0_18], %69 {strides = array<i32>} : memref<128x200xf32, #tpu.memory_space<vmem>>, vector<128x200xf32>,
    return
  }
  func.func @transform_0(%arg0: i32) -> (i32, i32) {
    %c0_i32 = arith.constant 0 : i32
    %c0_i32_0 = arith.constant 0 : i32
    return %arg0, %c0_i32 : i32, i32
  }
  func.func @transform_1(%arg0: i32) -> (i32, i32) {
    %c0_i32 = arith.constant 0 : i32
    %c0_i32_0 = arith.constant 0 : i32
    %c0_i32_1 = arith.constant 0 : i32
    return %c0_i32, %c0_i32_0 : i32, i32
  }
  func.func @transform_2(%arg0: i32) -> (i32, i32) {
    %c0_i32 = arith.constant 0 : i32
    %c0_i32_0 = arith.constant 0 : i32
    return %arg0, %c0_i32 : i32, i32
  }
}

</mosaic_0001>

<llo_original>
// kernel: tpu_custom_call.1
$region0: #{tpu_custom_call.1}
  #allocation0 [shape = 'u32[]', space=smem, size = 0x4, offset = 0x4, fixed_abs, tag = 'smem constant byte address 0x4 - core index']
  #allocation1 [shape = 'u32[144,128]{1,0:T(1,128)}', space=vmem, size = 0x12000, scoped, tag = 'internal scratch']
  %s0 = inlined_call_operand.vmem [shape: f32[300,2], index: 0, kind: input, shape index: {}]
  %s1 = inlined_call_operand.vmem [shape: f32[3,200], index: 1, kind: input, shape index: {}]
  %s2 = inlined_call_operand.vmem [shape: f32[300,200], index: 2, kind: output, shape index: {}]
  %s3 = sld [smem:[#allocation0]]
  $region67: #{tpu_custom_call.1} parent=0
    _
  %s5 = ssub.s32 1, %s3
  %s6 = scalar_select 0, %s5, %s3
  $region1: #{tpu_custom_call.1} parent=0
    #allocation2 [shape = 'u8[262144]{0}', space=vmem, size = 0x40000, scoped, tag = 'output window, operand 0']
    loop: start=0, step=1, limit=5
    $region2: #{tpu_custom_call.1} parent=1 // loop_pre_header
      _
    $region3: #{tpu_custom_call.1} parent=1 // loop_header
      %s8 = sphi 0, %s12
      %p9 = scmp.ge.s32.totalorder %s8, 5
      %s18 = sphi 0, %s20
      %s21 = sphi 0, %s18
      %s22 = sphi 0, %s21
      %s38 = sphi 0, %s22
      %s42 = sphi 0, %s42
      %s44 = sphi 0, %s42
      %s45 = sphi 0, %s44
      %s59 = sphi 0, %s45
      %s65 = sphi 0, %s67
      %s68 = sphi 0, %s65
      %s69 = sphi 0, %s68
      %s85 = sphi 0, %s69
    $region4: #{tpu_custom_call.1} parent=1 // loop_header_branch
      %11 = sbr.rel (%p9) target = $region8
    $region5: #{tpu_custom_call.1} parent=1 // loop_body
      %s13 = ssub.s32 %s8, 1
      %s14 = ssub.s32 %s8, 2
      %s15 = sadd.s32 %s8, 1
      %s16 = ssub.s32 %s8, %s15
      %p17 = scmp.eq.s32.totalorder %s16, 0
      %s19 = sadd.s32 %s18, 1
      %s20 = scalar_select %p17, %s18, %s19
      %p23 = pneg %p17
      %p24 = scmp.eq.s32.totalorder %s8, 2
      %p25 = por %p23, %p24
      %p26 = scmp.ne.s32.totalorder %s18, %s21
      %p27 = scmp.eq.s32.totalorder %s8, 0
      %p28 = por %p26, %p27
      %p29 = scmp.ne.s32.totalorder %s18, %s21
      %p30 = scmp.eq.s32.totalorder %s13, 2
      %p31 = por %p29, %p30
      %p32 = scmp.ne.s32.totalorder %s21, %s22
      %p33 = scmp.eq.s32.totalorder %s13, 0
      %p34 = por %p32, %p33
      %p35 = scmp.ne.s32.totalorder %s21, %s22
      %p36 = scmp.eq.s32.totalorder %s14, 2
      %p37 = por %p35, %p36
      %p39 = scmp.ne.s32.totalorder %s22, %s38
      %p40 = scmp.eq.s32.totalorder %s14, 0
      %p41 = por %p39, %p40
      %s43 = sadd.s32 %s42, 1
      %p46 = scmp.eq.s32.totalorder %s8, 2
      %p47 = scmp.ne.s32.totalorder %s42, %s44
      %p48 = scmp.eq.s32.totalorder %s8, 0
      %p49 = por %p47, %p48
      %p50 = scmp.ne.s32.totalorder %s42, %s44
      %p51 = scmp.eq.s32.totalorder %s13, 2
      %p52 = por %p50, %p51
      %p53 = scmp.ne.s32.totalorder %s44, %s45
      %p54 = scmp.eq.s32.totalorder %s13, 0
      %p55 = por %p53, %p54
      %p56 = scmp.ne.s32.totalorder %s44, %s45
      %p57 = scmp.eq.s32.totalorder %s14, 2
      %p58 = por %p56, %p57
      %p60 = scmp.ne.s32.totalorder %s45, %s59
      %p61 = scmp.eq.s32.totalorder %s14, 0
      %p62 = por %p60, %p61
      %s63 = ssub.s32 %s8, %s15
      %p64 = scmp.eq.s32.totalorder %s63, 0
      %s66 = sadd.s32 %s65, 1
      %s67 = scalar_select %p64, %s65, %s66
      %p70 = pneg %p64
      %p71 = scmp.eq.s32.totalorder %s8, 2
      %p72 = por %p70, %p71
      %p73 = scmp.ne.s32.totalorder %s65, %s68
      %p74 = scmp.eq.s32.totalorder %s8, 0
      %p75 = por %p73, %p74
      %p76 = scmp.ne.s32.totalorder %s65, %s68
      %p77 = scmp.eq.s32.totalorder %s13, 2
      %p78 = por %p76, %p77
      %p79 = scmp.ne.s32.totalorder %s68, %s69
      %p80 = scmp.eq.s32.totalorder %s13, 0
      %p81 = por %p79, %p80
      %p82 = scmp.ne.s32.totalorder %s68, %s69
      %p83 = scmp.eq.s32.totalorder %s14, 2
      %p84 = por %p82, %p83
      %p86 = scmp.ne.s32.totalorder %s69, %s85
      %p87 = scmp.eq.s32.totalorder %s14, 0
      %p88 = por %p86, %p87
      %p89 = scmp.le.s32.totalorder 1, %s8
      %p90 = scmp.lt.s32.totalorder %s8, 4
      %p91 = pnand %p89, %p90
      %p92 = pneg %p91
      // Predicated region
      $region9: #{tpu_custom_call.1} parent=5 // pred_check
        _
      $region10: #{tpu_custom_call.1} parent=5 // pred_check_branch
        %94 = sbr.rel (%p91) target = $region12
      $region11: #{tpu_custom_call.1} parent=5 // pred_region
        %s95 = ssub.s32 %s8, 1
        // Predicated region
        $region13: #{tpu_custom_call.1} parent=11 // pred_check
          %p96 = pneg %p55
        $region14: #{tpu_custom_call.1} parent=11 // pred_check_branch
          %98 = sbr.rel (%p96) target = $region16
        $region15: #{tpu_custom_call.1} parent=11 // pred_region
          _
        $region16: #{tpu_custom_call.1} parent=11 // pred_fallthru
          _
      $region12: #{tpu_custom_call.1} parent=5 // pred_fallthru
        _
      %p99 = scmp.lt.s32.totalorder %s8, 3
      // Predicated region
      $region17: #{tpu_custom_call.1} parent=5 // pred_check
        %p100 = pneg %p99
      $region18: #{tpu_custom_call.1} parent=5 // pred_check_branch
        %102 = sbr.rel (%p100) target = $region20
      $region19: #{tpu_custom_call.1} parent=5 // pred_region
        // Predicated region
        $region21: #{tpu_custom_call.1} parent=19 // pred_check
          %p103 = pneg %p28
        $region22: #{tpu_custom_call.1} parent=19 // pred_check_branch
          %105 = sbr.rel (%p103) target = $region24
        $region23: #{tpu_custom_call.1} parent=19 // pred_region
          %s106 = smul.u32 16, %s8
          %s107 = ssub.s32 38, %s106
          %p108 = scmp.lt.s32.totalorder %s107, 16
          %s109 = scalar_select %p108, %s107, 16
          %s110 = smul.u32 128, %s109
          %p111 = scmp.lt.s32.totalorder %s106, 37
          %s112 = scalar_select %p111, %s106, 37
          %s113 = smul.addr %s112, 8
          %s114 = scalar_lea.vmem %s0, %s113
          %s115 = smul.u32 16, %s8
          %s116 = ssub.s32 38, %s115
          %p117 = scmp.lt.s32.totalorder %s116, 16
          %s118 = scalar_select %p117, %s116, 16
          %s119 = smul.u32 128, %s118
        $region24: #{tpu_custom_call.1} parent=19 // pred_fallthru
          _
      $region20: #{tpu_custom_call.1} parent=5 // pred_fallthru
        _
      %p120 = scmp.le.s32.totalorder 1, %s8
      %p121 = scmp.lt.s32.totalorder %s8, 4
      %p122 = pnand %p120, %p121
      %p123 = pneg %p122
      // Predicated region
      $region25: #{tpu_custom_call.1} parent=5 // pred_check
        _
      $region26: #{tpu_custom_call.1} parent=5 // pred_check_branch
        %125 = sbr.rel (%p122) target = $region28
      $region27: #{tpu_custom_call.1} parent=5 // pred_region
        %s126 = ssub.s32 %s8, 1
        %s127 = smul.u32 16, %s13
        %s128 = ssub.s32 38, %s127
        %p129 = scmp.lt.s32.totalorder %s128, 16
        %s130 = scalar_select %p129, %s128, 16
        %s131 = smul.u32 128, %s130
        %p132 = scmp.lt.s32.totalorder %s127, 37
        %s133 = scalar_select %p132, %s127, 37
        %s134 = smul.addr %s133, 8
        %s135 = scalar_lea.vmem %s0, %s134
        %p136 = pneg %p34
        %p137 = pneg %p31
        %p138 = pneg %p55
        %p139 = pneg %p52
        %p140 = pneg %p81
        %p141 = pneg %p78
        %s142 = sand.u32 %s68, 1
        %s143 = sand.u32 %s68, 1
        %s144 = smul.addr %s143, 256
        %s145 = scalar_lea.vmem [#allocation2], %s144
        %s146 = smul.u32 16, %s13
        %s147 = ssub.s32 38, %s146
        %p148 = scmp.lt.s32.totalorder %s147, 16
        %s149 = scalar_select %p148, %s147, 16
        %s150 = smul.u32 128, %s149
        %p151 = scmp.lt.s32.totalorder %s146, 37
        %s152 = scalar_select %p151, %s146, 37
        %s153 = smul.addr %s152, 8
        %s154 = scalar_lea.vmem %s0, %s153
        %s155 = smul.u32 16, %s13
        %s156 = ssub.s32 38, %s155
        %p157 = scmp.lt.s32.totalorder %s156, 16
        %s158 = scalar_select %p157, %s156, 16
        %s159 = smul.u32 128, %s158
        %s160 = smul.u32 16, %s13
        %s161 = ssub.s32 38, %s160
        %p162 = scmp.lt.s32.totalorder %s161, 16
        %s163 = scalar_select %p162, %s161, 16
        %s164 = smul.u32 128, %s163
        %s165 = smul.u32 %s164, 2
        %v166 = vld [vmem:[%s154] sm:$0xff]
        %v167 = vld [vmem:[%s154 + $0x8] sm:$0xff]
        %v168 = vld [vmem:[%s154 + $0x10] sm:$0xff]
        %v169 = vld [vmem:[%s154 + $0x18] sm:$0xff]
        %v170 = vld [vmem:[%s154 + $0x20] sm:$0xff]
        %v171 = vld [vmem:[%s154 + $0x28] sm:$0xff]
        %v172 = vld [vmem:[%s154 + $0x30] sm:$0xff]
        %v173 = vld [vmem:[%s154 + $0x38] sm:$0xff]
        %v174 = vld [vmem:[%s154 + $0x40] sm:$0xff]
        %v175 = vld [vmem:[%s154 + $0x48] sm:$0xff]
        %v176 = vld [vmem:[%s154 + $0x50] sm:$0xff]
        %v177 = vld [vmem:[%s154 + $0x58] sm:$0xff]
        %v178 = vld [vmem:[%s154 + $0x60] sm:$0xff]
        %v179 = vld [vmem:[%s154 + $0x68] sm:$0xff]
        %v180 = vld [vmem:[%s154 + $0x70] sm:$0xff]
        %v181 = vld [vmem:[%s154 + $0x78] sm:$0xff]
        %v182 = vld [vmem:[%s1] sm:$0x77]
        %184 = vset.pattern.permute.xlu0 0
        %185 = vperm.xlu0 %184, %v166
        %v186 = vpop.permute.xlu0 %185
        %189 = vset.pattern.permute.xlu0 0
        %190 = vperm.xlu0 %189, %v167
        %v191 = vpop.permute.xlu0 %190
        %194 = vset.pattern.permute.xlu0 0
        %195 = vperm.xlu0 %194, %v168
        %v196 = vpop.permute.xlu0 %195
        %199 = vset.pattern.permute.xlu0 0
        %200 = vperm.xlu0 %199, %v169
        %v201 = vpop.permute.xlu0 %200
        %204 = vset.pattern.permute.xlu0 0
        %205 = vperm.xlu0 %204, %v170
        %v206 = vpop.permute.xlu0 %205
        %209 = vset.pattern.permute.xlu0 0
        %210 = vperm.xlu0 %209, %v171
        %v211 = vpop.permute.xlu0 %210
        %214 = vset.pattern.permute.xlu0 0
        %215 = vperm.xlu0 %214, %v172
        %v216 = vpop.permute.xlu0 %215
        %219 = vset.pattern.permute.xlu0 0
        %220 = vperm.xlu0 %219, %v173
        %v221 = vpop.permute.xlu0 %220
        %224 = vset.pattern.permute.xlu0 0
        %225 = vperm.xlu0 %224, %v174
        %v226 = vpop.permute.xlu0 %225
        %229 = vset.pattern.permute.xlu0 0
        %230 = vperm.xlu0 %229, %v175
        %v231 = vpop.permute.xlu0 %230
        %234 = vset.pattern.permute.xlu0 0
        %235 = vperm.xlu0 %234, %v176
        %v236 = vpop.permute.xlu0 %235
        %239 = vset.pattern.permute.xlu0 0
        %240 = vperm.xlu0 %239, %v177
        %v241 = vpop.permute.xlu0 %240
        %244 = vset.pattern.permute.xlu0 0
        %245 = vperm.xlu0 %244, %v178
        %v246 = vpop.permute.xlu0 %245
        %249 = vset.pattern.permute.xlu0 0
        %250 = vperm.xlu0 %249, %v179
        %v251 = vpop.permute.xlu0 %250
        %254 = vset.pattern.permute.xlu0 0
        %255 = vperm.xlu0 %254, %v180
        %v256 = vpop.permute.xlu0 %255
        %259 = vset.pattern.permute.xlu0 0
        %260 = vperm.xlu0 %259, %v181
        %v261 = vpop.permute.xlu0 %260
        %v264 = vlaneseq
        %v265 = vshrl.u32 %v264, 7
        %v266 = vsub.s32 0, %v265
        %v267 = vrot.slane %v182, %v266
        %v268 = vlaneseq
        %v269 = vshrl.u32 %v268, 7
        %v270 = vsub.s32 4, %v269
        %v271 = vrot.slane %v182, %v270
        %v274 = vlaneseq
        %v275 = vshrl.u32 %v274, 7
        %v276 = vsub.s32 0, %v275
        %v277 = vrot.slane %v267, %v276
        %v278 = vlaneseq
        %v279 = vshrl.u32 %v278, 7
        %v280 = vsub.s32 0, %v279
        %v281 = vrot.slane %v271, %v280
        %v282 = vmul.f32 %v186, %v277
        %v283 = vmul.f32 %v186, %v281
        %v284 = vmul.f32 %v191, %v277
        %v285 = vmul.f32 %v191, %v281
        %v286 = vmul.f32 %v196, %v277
        %v287 = vmul.f32 %v196, %v281
        %v288 = vmul.f32 %v201, %v277
        %v289 = vmul.f32 %v201, %v281
        %v290 = vmul.f32 %v206, %v277
        %v291 = vmul.f32 %v206, %v281
        %v292 = vmul.f32 %v211, %v277
        %v293 = vmul.f32 %v211, %v281
        %v294 = vmul.f32 %v216, %v277
        %v295 = vmul.f32 %v216, %v281
        %v296 = vmul.f32 %v221, %v277
        %v297 = vmul.f32 %v221, %v281
        %v298 = vmul.f32 %v226, %v277
        %v299 = vmul.f32 %v226, %v281
        %v300 = vmul.f32 %v231, %v277
        %v301 = vmul.f32 %v231, %v281
        %v302 = vmul.f32 %v236, %v277
        %v303 = vmul.f32 %v236, %v281
        %v304 = vmul.f32 %v241, %v277
        %v305 = vmul.f32 %v241, %v281
        %v306 = vmul.f32 %v246, %v277
        %v307 = vmul.f32 %v246, %v281
        %v308 = vmul.f32 %v251, %v277
        %v309 = vmul.f32 %v251, %v281
        %v310 = vmul.f32 %v256, %v277
        %v311 = vmul.f32 %v256, %v281
        %v312 = vmul.f32 %v261, %v277
        %v313 = vmul.f32 %v261, %v281
        %314 = vset.pattern.permute.xlu0 1
        %315 = vperm.xlu0 %314, %v166
        %v316 = vpop.permute.xlu0 %315
        %318 = vset.pattern.permute.xlu0 1
        %319 = vperm.xlu0 %318, %v167
        %v320 = vpop.permute.xlu0 %319
        %322 = vset.pattern.permute.xlu0 1
        %323 = vperm.xlu0 %322, %v168
        %v324 = vpop.permute.xlu0 %323
        %326 = vset.pattern.permute.xlu0 1
        %327 = vperm.xlu0 %326, %v169
        %v328 = vpop.permute.xlu0 %327
        %330 = vset.pattern.permute.xlu0 1
        %331 = vperm.xlu0 %330, %v170
        %v332 = vpop.permute.xlu0 %331
        %334 = vset.pattern.permute.xlu0 1
        %335 = vperm.xlu0 %334, %v171
        %v336 = vpop.permute.xlu0 %335
        %338 = vset.pattern.permute.xlu0 1
        %339 = vperm.xlu0 %338, %v172
        %v340 = vpop.permute.xlu0 %339
        %342 = vset.pattern.permute.xlu0 1
        %343 = vperm.xlu0 %342, %v173
        %v344 = vpop.permute.xlu0 %343
        %346 = vset.pattern.permute.xlu0 1
        %347 = vperm.xlu0 %346, %v174
        %v348 = vpop.permute.xlu0 %347
        %350 = vset.pattern.permute.xlu0 1
        %351 = vperm.xlu0 %350, %v175
        %v352 = vpop.permute.xlu0 %351
        %354 = vset.pattern.permute.xlu0 1
        %355 = vperm.xlu0 %354, %v176
        %v356 = vpop.permute.xlu0 %355
        %358 = vset.pattern.permute.xlu0 1
        %359 = vperm.xlu0 %358, %v177
        %v360 = vpop.permute.xlu0 %359
        %362 = vset.pattern.permute.xlu0 1
        %363 = vperm.xlu0 %362, %v178
        %v364 = vpop.permute.xlu0 %363
        %366 = vset.pattern.permute.xlu0 1
        %367 = vperm.xlu0 %366, %v179
        %v368 = vpop.permute.xlu0 %367
        %370 = vset.pattern.permute.xlu0 1
        %371 = vperm.xlu0 %370, %v180
        %v372 = vpop.permute.xlu0 %371
        %374 = vset.pattern.permute.xlu0 1
        %375 = vperm.xlu0 %374, %v181
        %v376 = vpop.permute.xlu0 %375
        %v378 = vlaneseq
        %v379 = vshrl.u32 %v378, 7
        %v380 = vsub.s32 1, %v379
        %v381 = vrot.slane %v182, %v380
        %v382 = vlaneseq
        %v383 = vshrl.u32 %v382, 7
        %v384 = vsub.s32 5, %v383
        %v385 = vrot.slane %v182, %v384
        %v388 = vlaneseq
        %v389 = vshrl.u32 %v388, 7
        %v390 = vsub.s32 1, %v389
        %v391 = vrot.slane %v381, %v390
        %v392 = vlaneseq
        %v393 = vshrl.u32 %v392, 7
        %v394 = vsub.s32 1, %v393
        %v395 = vrot.slane %v385, %v394
        %v396 = vmul.f32 %v316, %v391
        %v397 = vmul.f32 %v316, %v395
        %v398 = vmul.f32 %v320, %v391
        %v399 = vmul.f32 %v320, %v395
        %v400 = vmul.f32 %v324, %v391
        %v401 = vmul.f32 %v324, %v395
        %v402 = vmul.f32 %v328, %v391
        %v403 = vmul.f32 %v328, %v395
        %v404 = vmul.f32 %v332, %v391
        %v405 = vmul.f32 %v332, %v395
        %v406 = vmul.f32 %v336, %v391
        %v407 = vmul.f32 %v336, %v395
        %v408 = vmul.f32 %v340, %v391
        %v409 = vmul.f32 %v340, %v395
        %v410 = vmul.f32 %v344, %v391
        %v411 = vmul.f32 %v344, %v395
        %v412 = vmul.f32 %v348, %v391
        %v413 = vmul.f32 %v348, %v395
        %v414 = vmul.f32 %v352, %v391
        %v415 = vmul.f32 %v352, %v395
        %v416 = vmul.f32 %v356, %v391
        %v417 = vmul.f32 %v356, %v395
        %v418 = vmul.f32 %v360, %v391
        %v419 = vmul.f32 %v360, %v395
        %v420 = vmul.f32 %v364, %v391
        %v421 = vmul.f32 %v364, %v395
        %v422 = vmul.f32 %v368, %v391
        %v423 = vmul.f32 %v368, %v395
        %v424 = vmul.f32 %v372, %v391
        %v425 = vmul.f32 %v372, %v395
        %v426 = vmul.f32 %v376, %v391
        %v427 = vmul.f32 %v376, %v395
        %v428 = vadd.f32 %v282, %v396
        %v429 = vadd.f32 %v283, %v397
        %v430 = vadd.f32 %v284, %v398
        %v431 = vadd.f32 %v285, %v399
        %v432 = vadd.f32 %v286, %v400
        %v433 = vadd.f32 %v287, %v401
        %v434 = vadd.f32 %v288, %v402
        %v435 = vadd.f32 %v289, %v403
        %v436 = vadd.f32 %v290, %v404
        %v437 = vadd.f32 %v291, %v405
        %v438 = vadd.f32 %v292, %v406
        %v439 = vadd.f32 %v293, %v407
        %v440 = vadd.f32 %v294, %v408
        %v441 = vadd.f32 %v295, %v409
        %v442 = vadd.f32 %v296, %v410
        %v443 = vadd.f32 %v297, %v411
        %v444 = vadd.f32 %v298, %v412
        %v445 = vadd.f32 %v299, %v413
        %v446 = vadd.f32 %v300, %v414
        %v447 = vadd.f32 %v301, %v415
        %v448 = vadd.f32 %v302, %v416
        %v449 = vadd.f32 %v303, %v417
        %v450 = vadd.f32 %v304, %v418
        %v451 = vadd.f32 %v305, %v419
        %v452 = vadd.f32 %v306, %v420
        %v453 = vadd.f32 %v307, %v421
        %v454 = vadd.f32 %v308, %v422
        %v455 = vadd.f32 %v309, %v423
        %v456 = vadd.f32 %v310, %v424
        %v457 = vadd.f32 %v311, %v425
        %v458 = vadd.f32 %v312, %v426
        %v459 = vadd.f32 %v313, %v427
        %v460 = vmul.f32 %v428, 0.63661975
        %v461 = vmul.f32 %v429, 0.63661975
        %v462 = vmul.f32 %v430, 0.63661975
        %v463 = vmul.f32 %v431, 0.63661975
        %v464 = vmul.f32 %v432, 0.63661975
        %v465 = vmul.f32 %v433, 0.63661975
        %v466 = vmul.f32 %v434, 0.63661975
        %v467 = vmul.f32 %v435, 0.63661975
        %v468 = vmul.f32 %v436, 0.63661975
        %v469 = vmul.f32 %v437, 0.63661975
        %v470 = vmul.f32 %v438, 0.63661975
        %v471 = vmul.f32 %v439, 0.63661975
        %v472 = vmul.f32 %v440, 0.63661975
        %v473 = vmul.f32 %v441, 0.63661975
        %v474 = vmul.f32 %v442, 0.63661975
        %v475 = vmul.f32 %v443, 0.63661975
        %v476 = vmul.f32 %v444, 0.63661975
        %v477 = vmul.f32 %v445, 0.63661975
        %v478 = vmul.f32 %v446, 0.63661975
        %v479 = vmul.f32 %v447, 0.63661975
        %v480 = vmul.f32 %v448, 0.63661975
        %v481 = vmul.f32 %v449, 0.63661975
        %v482 = vmul.f32 %v450, 0.63661975
        %v483 = vmul.f32 %v451, 0.63661975
        %v484 = vmul.f32 %v452, 0.63661975
        %v485 = vmul.f32 %v453, 0.63661975
        %v486 = vmul.f32 %v454, 0.63661975
        %v487 = vmul.f32 %v455, 0.63661975
        %v488 = vmul.f32 %v456, 0.63661975
        %v489 = vmul.f32 %v457, 0.63661975
        %v490 = vmul.f32 %v458, 0.63661975
        %v491 = vmul.f32 %v459, 0.63661975
        %v492 = vadd.f32 %v460, 0.5
        %v493 = vadd.f32 %v461, 0.5
        %v494 = vadd.f32 %v462, 0.5
        %v495 = vadd.f32 %v463, 0.5
        %v496 = vadd.f32 %v464, 0.5
        %v497 = vadd.f32 %v465, 0.5
        %v498 = vadd.f32 %v466, 0.5
        %v499 = vadd.f32 %v467, 0.5
        %v500 = vadd.f32 %v468, 0.5
        %v501 = vadd.f32 %v469, 0.5
        %v502 = vadd.f32 %v470, 0.5
        %v503 = vadd.f32 %v471, 0.5
        %v504 = vadd.f32 %v472, 0.5
        %v505 = vadd.f32 %v473, 0.5
        %v506 = vadd.f32 %v474, 0.5
        %v507 = vadd.f32 %v475, 0.5
        %v508 = vadd.f32 %v476, 0.5
        %v509 = vadd.f32 %v477, 0.5
        %v510 = vadd.f32 %v478, 0.5
        %v511 = vadd.f32 %v479, 0.5
        %v512 = vadd.f32 %v480, 0.5
        %v513 = vadd.f32 %v481, 0.5
        %v514 = vadd.f32 %v482, 0.5
        %v515 = vadd.f32 %v483, 0.5
        %v516 = vadd.f32 %v484, 0.5
        %v517 = vadd.f32 %v485, 0.5
        %v518 = vadd.f32 %v486, 0.5
        %v519 = vadd.f32 %v487, 0.5
        %v520 = vadd.f32 %v488, 0.5
        %v521 = vadd.f32 %v489, 0.5
        %v522 = vadd.f32 %v490, 0.5
        %v523 = vadd.f32 %v491, 0.5
        %v524 = vfloor.f32 %v492
        %v525 = vfloor.f32 %v493
        %v526 = vfloor.f32 %v494
        %v527 = vfloor.f32 %v495
        %v528 = vfloor.f32 %v496
        %v529 = vfloor.f32 %v497
        %v530 = vfloor.f32 %v498
        %v531 = vfloor.f32 %v499
        %v532 = vfloor.f32 %v500
        %v533 = vfloor.f32 %v501
        %v534 = vfloor.f32 %v502
        %v535 = vfloor.f32 %v503
        %v536 = vfloor.f32 %v504
        %v537 = vfloor.f32 %v505
        %v538 = vfloor.f32 %v506
        %v539 = vfloor.f32 %v507
        %v540 = vfloor.f32 %v508
        %v541 = vfloor.f32 %v509
        %v542 = vfloor.f32 %v510
        %v543 = vfloor.f32 %v511
        %v544 = vfloor.f32 %v512
        %v545 = vfloor.f32 %v513
        %v546 = vfloor.f32 %v514
        %v547 = vfloor.f32 %v515
        %v548 = vfloor.f32 %v516
        %v549 = vfloor.f32 %v517
        %v550 = vfloor.f32 %v518
        %v551 = vfloor.f32 %v519
        %v552 = vfloor.f32 %v520
        %v553 = vfloor.f32 %v521
        %v554 = vfloor.f32 %v522
        %v555 = vfloor.f32 %v523
        %v556 = vmul.f32 %v524, 1.5703125
        %v557 = vmul.f32 %v525, 1.5703125
        %v558 = vmul.f32 %v526, 1.5703125
        %v559 = vmul.f32 %v527, 1.5703125
        %v560 = vmul.f32 %v528, 1.5703125
        %v561 = vmul.f32 %v529, 1.5703125
        %v562 = vmul.f32 %v530, 1.5703125
        %v563 = vmul.f32 %v531, 1.5703125
        %v564 = vmul.f32 %v532, 1.5703125
        %v565 = vmul.f32 %v533, 1.5703125
        %v566 = vmul.f32 %v534, 1.5703125
        %v567 = vmul.f32 %v535, 1.5703125
        %v568 = vmul.f32 %v536, 1.5703125
        %v569 = vmul.f32 %v537, 1.5703125
        %v570 = vmul.f32 %v538, 1.5703125
        %v571 = vmul.f32 %v539, 1.5703125
        %v572 = vmul.f32 %v540, 1.5703125
        %v573 = vmul.f32 %v541, 1.5703125
        %v574 = vmul.f32 %v542, 1.5703125
        %v575 = vmul.f32 %v543, 1.5703125
        %v576 = vmul.f32 %v544, 1.5703125
        %v577 = vmul.f32 %v545, 1.5703125
        %v578 = vmul.f32 %v546, 1.5703125
        %v579 = vmul.f32 %v547, 1.5703125
        %v580 = vmul.f32 %v548, 1.5703125
        %v581 = vmul.f32 %v549, 1.5703125
        %v582 = vmul.f32 %v550, 1.5703125
        %v583 = vmul.f32 %v551, 1.5703125
        %v584 = vmul.f32 %v552, 1.5703125
        %v585 = vmul.f32 %v553, 1.5703125
        %v586 = vmul.f32 %v554, 1.5703125
        %v587 = vmul.f32 %v555, 1.5703125
        %v588 = vsub.f32 %v428, %v556
        %v589 = vsub.f32 %v429, %v557
        %v590 = vsub.f32 %v430, %v558
        %v591 = vsub.f32 %v431, %v559
        %v592 = vsub.f32 %v432, %v560
        %v593 = vsub.f32 %v433, %v561
        %v594 = vsub.f32 %v434, %v562
        %v595 = vsub.f32 %v435, %v563
        %v596 = vsub.f32 %v436, %v564
        %v597 = vsub.f32 %v437, %v565
        %v598 = vsub.f32 %v438, %v566
        %v599 = vsub.f32 %v439, %v567
        %v600 = vsub.f32 %v440, %v568
        %v601 = vsub.f32 %v441, %v569
        %v602 = vsub.f32 %v442, %v570
        %v603 = vsub.f32 %v443, %v571
        %v604 = vsub.f32 %v444, %v572
        %v605 = vsub.f32 %v445, %v573
        %v606 = vsub.f32 %v446, %v574
        %v607 = vsub.f32 %v447, %v575
        %v608 = vsub.f32 %v448, %v576
        %v609 = vsub.f32 %v449, %v577
        %v610 = vsub.f32 %v450, %v578
        %v611 = vsub.f32 %v451, %v579
        %v612 = vsub.f32 %v452, %v580
        %v613 = vsub.f32 %v453, %v581
        %v614 = vsub.f32 %v454, %v582
        %v615 = vsub.f32 %v455, %v583
        %v616 = vsub.f32 %v456, %v584
        %v617 = vsub.f32 %v457, %v585
        %v618 = vsub.f32 %v458, %v586
        %v619 = vsub.f32 %v459, %v587
        %v620 = vmul.f32 %v524, 0.0004837513
        %v621 = vmul.f32 %v525, 0.0004837513
        %v622 = vmul.f32 %v526, 0.0004837513
        %v623 = vmul.f32 %v527, 0.0004837513
        %v624 = vmul.f32 %v528, 0.0004837513
        %v625 = vmul.f32 %v529, 0.0004837513
        %v626 = vmul.f32 %v530, 0.0004837513
        %v627 = vmul.f32 %v531, 0.0004837513
        %v628 = vmul.f32 %v532, 0.0004837513
        %v629 = vmul.f32 %v533, 0.0004837513
        %v630 = vmul.f32 %v534, 0.0004837513
        %v631 = vmul.f32 %v535, 0.0004837513
        %v632 = vmul.f32 %v536, 0.0004837513
        %v633 = vmul.f32 %v537, 0.0004837513
        %v634 = vmul.f32 %v538, 0.0004837513
        %v635 = vmul.f32 %v539, 0.0004837513
        %v636 = vmul.f32 %v540, 0.0004837513
        %v637 = vmul.f32 %v541, 0.0004837513
        %v638 = vmul.f32 %v542, 0.0004837513
        %v639 = vmul.f32 %v543, 0.0004837513
        %v640 = vmul.f32 %v544, 0.0004837513
        %v641 = vmul.f32 %v545, 0.0004837513
        %v642 = vmul.f32 %v546, 0.0004837513
        %v643 = vmul.f32 %v547, 0.0004837513
        %v644 = vmul.f32 %v548, 0.0004837513
        %v645 = vmul.f32 %v549, 0.0004837513
        %v646 = vmul.f32 %v550, 0.0004837513
        %v647 = vmul.f32 %v551, 0.0004837513
        %v648 = vmul.f32 %v552, 0.0004837513
        %v649 = vmul.f32 %v553, 0.0004837513
        %v650 = vmul.f32 %v554, 0.0004837513
        %v651 = vmul.f32 %v555, 0.0004837513
        %v652 = vsub.f32 %v588, %v620
        %v653 = vsub.f32 %v589, %v621
        %v654 = vsub.f32 %v590, %v622
        %v655 = vsub.f32 %v591, %v623
        %v656 = vsub.f32 %v592, %v624
        %v657 = vsub.f32 %v593, %v625
        %v658 = vsub.f32 %v594, %v626
        %v659 = vsub.f32 %v595, %v627
        %v660 = vsub.f32 %v596, %v628
        %v661 = vsub.f32 %v597, %v629
        %v662 = vsub.f32 %v598, %v630
        %v663 = vsub.f32 %v599, %v631
        %v664 = vsub.f32 %v600, %v632
        %v665 = vsub.f32 %v601, %v633
        %v666 = vsub.f32 %v602, %v634
        %v667 = vsub.f32 %v603, %v635
        %v668 = vsub.f32 %v604, %v636
        %v669 = vsub.f32 %v605, %v637
        %v670 = vsub.f32 %v606, %v638
        %v671 = vsub.f32 %v607, %v639
        %v672 = vsub.f32 %v608, %v640
        %v673 = vsub.f32 %v609, %v641
        %v674 = vsub.f32 %v610, %v642
        %v675 = vsub.f32 %v611, %v643
        %v676 = vsub.f32 %v612, %v644
        %v677 = vsub.f32 %v613, %v645
        %v678 = vsub.f32 %v614, %v646
        %v679 = vsub.f32 %v615, %v647
        %v680 = vsub.f32 %v616, %v648
        %v681 = vsub.f32 %v617, %v649
        %v682 = vsub.f32 %v618, %v650
        %v683 = vsub.f32 %v619, %v651
        %v684 = vmul.f32 %v524, 7.54979e-08
        %v685 = vmul.f32 %v525, 7.54979e-08
        %v686 = vmul.f32 %v526, 7.54979e-08
        %v687 = vmul.f32 %v527, 7.54979e-08
        %v688 = vmul.f32 %v528, 7.54979e-08
        %v689 = vmul.f32 %v529, 7.54979e-08
        %v690 = vmul.f32 %v530, 7.54979e-08
        %v691 = vmul.f32 %v531, 7.54979e-08
        %v692 = vmul.f32 %v532, 7.54979e-08
        %v693 = vmul.f32 %v533, 7.54979e-08
        %v694 = vmul.f32 %v534, 7.54979e-08
        %v695 = vmul.f32 %v535, 7.54979e-08
        %v696 = vmul.f32 %v536, 7.54979e-08
        %v697 = vmul.f32 %v537, 7.54979e-08
        %v698 = vmul.f32 %v538, 7.54979e-08
        %v699 = vmul.f32 %v539, 7.54979e-08
        %v700 = vmul.f32 %v540, 7.54979e-08
        %v701 = vmul.f32 %v541, 7.54979e-08
        %v702 = vmul.f32 %v542, 7.54979e-08
        %v703 = vmul.f32 %v543, 7.54979e-08
        %v704 = vmul.f32 %v544, 7.54979e-08
        %v705 = vmul.f32 %v545, 7.54979e-08
        %v706 = vmul.f32 %v546, 7.54979e-08
        %v707 = vmul.f32 %v547, 7.54979e-08
        %v708 = vmul.f32 %v548, 7.54979e-08
        %v709 = vmul.f32 %v549, 7.54979e-08
        %v710 = vmul.f32 %v550, 7.54979e-08
        %v711 = vmul.f32 %v551, 7.54979e-08
        %v712 = vmul.f32 %v552, 7.54979e-08
        %v713 = vmul.f32 %v553, 7.54979e-08
        %v714 = vmul.f32 %v554, 7.54979e-08
        %v715 = vmul.f32 %v555, 7.54979e-08
        %v716 = vsub.f32 %v652, %v684
        %v717 = vsub.f32 %v653, %v685
        %v718 = vsub.f32 %v654, %v686
        %v719 = vsub.f32 %v655, %v687
        %v720 = vsub.f32 %v656, %v688
        %v721 = vsub.f32 %v657, %v689
        %v722 = vsub.f32 %v658, %v690
        %v723 = vsub.f32 %v659, %v691
        %v724 = vsub.f32 %v660, %v692
        %v725 = vsub.f32 %v661, %v693
        %v726 = vsub.f32 %v662, %v694
        %v727 = vsub.f32 %v663, %v695
        %v728 = vsub.f32 %v664, %v696
        %v729 = vsub.f32 %v665, %v697
        %v730 = vsub.f32 %v666, %v698
        %v731 = vsub.f32 %v667, %v699
        %v732 = vsub.f32 %v668, %v700
        %v733 = vsub.f32 %v669, %v701
        %v734 = vsub.f32 %v670, %v702
        %v735 = vsub.f32 %v671, %v703
        %v736 = vsub.f32 %v672, %v704
        %v737 = vsub.f32 %v673, %v705
        %v738 = vsub.f32 %v674, %v706
        %v739 = vsub.f32 %v675, %v707
        %v740 = vsub.f32 %v676, %v708
        %v741 = vsub.f32 %v677, %v709
        %v742 = vsub.f32 %v678, %v710
        %v743 = vsub.f32 %v679, %v711
        %v744 = vsub.f32 %v680, %v712
        %v745 = vsub.f32 %v681, %v713
        %v746 = vsub.f32 %v682, %v714
        %v747 = vsub.f32 %v683, %v715
        %v748 = vlaneseq
        %v749 = vshrl.u32 %v748, 7
        %v750 = vsub.s32 2, %v749
        %v751 = vrot.slane %v182, %v750
        %v752 = vlaneseq
        %v753 = vshrl.u32 %v752, 7
        %v754 = vsub.s32 6, %v753
        %v755 = vrot.slane %v182, %v754
        %v758 = vlaneseq
        %v759 = vshrl.u32 %v758, 7
        %v760 = vsub.s32 2, %v759
        %v761 = vrot.slane %v751, %v760
        %v762 = vlaneseq
        %v763 = vshrl.u32 %v762, 7
        %v764 = vsub.s32 2, %v763
        %v765 = vrot.slane %v755, %v764
        %v766 = vadd.f32 %v524, %v761
        %v767 = vadd.f32 %v525, %v765
        %v768 = vadd.f32 %v526, %v761
        %v769 = vadd.f32 %v527, %v765
        %v770 = vadd.f32 %v528, %v761
        %v771 = vadd.f32 %v529, %v765
        %v772 = vadd.f32 %v530, %v761
        %v773 = vadd.f32 %v531, %v765
        %v774 = vadd.f32 %v532, %v761
        %v775 = vadd.f32 %v533, %v765
        %v776 = vadd.f32 %v534, %v761
        %v777 = vadd.f32 %v535, %v765
        %v778 = vadd.f32 %v536, %v761
        %v779 = vadd.f32 %v537, %v765
        %v780 = vadd.f32 %v538, %v761
        %v781 = vadd.f32 %v539, %v765
        %v782 = vadd.f32 %v540, %v761
        %v783 = vadd.f32 %v541, %v765
        %v784 = vadd.f32 %v542, %v761
        %v785 = vadd.f32 %v543, %v765
        %v786 = vadd.f32 %v544, %v761
        %v787 = vadd.f32 %v545, %v765
        %v788 = vadd.f32 %v546, %v761
        %v789 = vadd.f32 %v547, %v765
        %v790 = vadd.f32 %v548, %v761
        %v791 = vadd.f32 %v549, %v765
        %v792 = vadd.f32 %v550, %v761
        %v793 = vadd.f32 %v551, %v765
        %v794 = vadd.f32 %v552, %v761
        %v795 = vadd.f32 %v553, %v765
        %v796 = vadd.f32 %v554, %v761
        %v797 = vadd.f32 %v555, %v765
        %v798 = vcvt.f32.s32.to.zero.pseudo %v766
        %v799 = vcvt.f32.s32.to.zero.pseudo %v767
        %v800 = vcvt.f32.s32.to.zero.pseudo %v768
        %v801 = vcvt.f32.s32.to.zero.pseudo %v769
        %v802 = vcvt.f32.s32.to.zero.pseudo %v770
        %v803 = vcvt.f32.s32.to.zero.pseudo %v771
        %v804 = vcvt.f32.s32.to.zero.pseudo %v772
        %v805 = vcvt.f32.s32.to.zero.pseudo %v773
        %v806 = vcvt.f32.s32.to.zero.pseudo %v774
        %v807 = vcvt.f32.s32.to.zero.pseudo %v775
        %v808 = vcvt.f32.s32.to.zero.pseudo %v776
        %v809 = vcvt.f32.s32.to.zero.pseudo %v777
        %v810 = vcvt.f32.s32.to.zero.pseudo %v778
        %v811 = vcvt.f32.s32.to.zero.pseudo %v779
        %v812 = vcvt.f32.s32.to.zero.pseudo %v780
        %v813 = vcvt.f32.s32.to.zero.pseudo %v781
        %v814 = vcvt.f32.s32.to.zero.pseudo %v782
        %v815 = vcvt.f32.s32.to.zero.pseudo %v783
        %v816 = vcvt.f32.s32.to.zero.pseudo %v784
        %v817 = vcvt.f32.s32.to.zero.pseudo %v785
        %v818 = vcvt.f32.s32.to.zero.pseudo %v786
        %v819 = vcvt.f32.s32.to.zero.pseudo %v787
        %v820 = vcvt.f32.s32.to.zero.pseudo %v788
        %v821 = vcvt.f32.s32.to.zero.pseudo %v789
        %v822 = vcvt.f32.s32.to.zero.pseudo %v790
        %v823 = vcvt.f32.s32.to.zero.pseudo %v791
        %v824 = vcvt.f32.s32.to.zero.pseudo %v792
        %v825 = vcvt.f32.s32.to.zero.pseudo %v793
        %v826 = vcvt.f32.s32.to.zero.pseudo %v794
        %v827 = vcvt.f32.s32.to.zero.pseudo %v795
        %v828 = vcvt.f32.s32.to.zero.pseudo %v796
        %v829 = vcvt.f32.s32.to.zero.pseudo %v797
        %v830 = vand.u32 %v798, 3
        %v831 = vand.u32 %v799, 3
        %v832 = vand.u32 %v800, 3
        %v833 = vand.u32 %v801, 3
        %v834 = vand.u32 %v802, 3
        %v835 = vand.u32 %v803, 3
        %v836 = vand.u32 %v804, 3
        %v837 = vand.u32 %v805, 3
        %v838 = vand.u32 %v806, 3
        %v839 = vand.u32 %v807, 3
        %v840 = vand.u32 %v808, 3
        %v841 = vand.u32 %v809, 3
        %v842 = vand.u32 %v810, 3
        %v843 = vand.u32 %v811, 3
        %v844 = vand.u32 %v812, 3
        %v845 = vand.u32 %v813, 3
        %v846 = vand.u32 %v814, 3
        %v847 = vand.u32 %v815, 3
        %v848 = vand.u32 %v816, 3
        %v849 = vand.u32 %v817, 3
        %v850 = vand.u32 %v818, 3
        %v851 = vand.u32 %v819, 3
        %v852 = vand.u32 %v820, 3
        %v853 = vand.u32 %v821, 3
        %v854 = vand.u32 %v822, 3
        %v855 = vand.u32 %v823, 3
        %v856 = vand.u32 %v824, 3
        %v857 = vand.u32 %v825, 3
        %v858 = vand.u32 %v826, 3
        %v859 = vand.u32 %v827, 3
        %v860 = vand.u32 %v828, 3
        %v861 = vand.u32 %v829, 3
        %v862 = vmul.f32 %v716, %v716
        %v863 = vmul.f32 %v717, %v717
        %v864 = vmul.f32 %v718, %v718
        %v865 = vmul.f32 %v719, %v719
        %v866 = vmul.f32 %v720, %v720
        %v867 = vmul.f32 %v721, %v721
        %v868 = vmul.f32 %v722, %v722
        %v869 = vmul.f32 %v723, %v723
        %v870 = vmul.f32 %v724, %v724
        %v871 = vmul.f32 %v725, %v725
        %v872 = vmul.f32 %v726, %v726
        %v873 = vmul.f32 %v727, %v727
        %v874 = vmul.f32 %v728, %v728
        %v875 = vmul.f32 %v729, %v729
        %v876 = vmul.f32 %v730, %v730
        %v877 = vmul.f32 %v731, %v731
        %v878 = vmul.f32 %v732, %v732
        %v879 = vmul.f32 %v733, %v733
        %v880 = vmul.f32 %v734, %v734
        %v881 = vmul.f32 %v735, %v735
        %v882 = vmul.f32 %v736, %v736
        %v883 = vmul.f32 %v737, %v737
        %v884 = vmul.f32 %v738, %v738
        %v885 = vmul.f32 %v739, %v739
        %v886 = vmul.f32 %v740, %v740
        %v887 = vmul.f32 %v741, %v741
        %v888 = vmul.f32 %v742, %v742
        %v889 = vmul.f32 %v743, %v743
        %v890 = vmul.f32 %v744, %v744
        %v891 = vmul.f32 %v745, %v745
        %v892 = vmul.f32 %v746, %v746
        %v893 = vmul.f32 %v747, %v747
        %v894 = vmul.f32 %v716, %v862
        %v895 = vmul.f32 %v717, %v863
        %v896 = vmul.f32 %v718, %v864
        %v897 = vmul.f32 %v719, %v865
        %v898 = vmul.f32 %v720, %v866
        %v899 = vmul.f32 %v721, %v867
        %v900 = vmul.f32 %v722, %v868
        %v901 = vmul.f32 %v723, %v869
        %v902 = vmul.f32 %v724, %v870
        %v903 = vmul.f32 %v725, %v871
        %v904 = vmul.f32 %v726, %v872
        %v905 = vmul.f32 %v727, %v873
        %v906 = vmul.f32 %v728, %v874
        %v907 = vmul.f32 %v729, %v875
        %v908 = vmul.f32 %v730, %v876
        %v909 = vmul.f32 %v731, %v877
        %v910 = vmul.f32 %v732, %v878
        %v911 = vmul.f32 %v733, %v879
        %v912 = vmul.f32 %v734, %v880
        %v913 = vmul.f32 %v735, %v881
        %v914 = vmul.f32 %v736, %v882
        %v915 = vmul.f32 %v737, %v883
        %v916 = vmul.f32 %v738, %v884
        %v917 = vmul.f32 %v739, %v885
        %v918 = vmul.f32 %v740, %v886
        %v919 = vmul.f32 %v741, %v887
        %v920 = vmul.f32 %v742, %v888
        %v921 = vmul.f32 %v743, %v889
        %v922 = vmul.f32 %v744, %v890
        %v923 = vmul.f32 %v745, %v891
        %v924 = vmul.f32 %v746, %v892
        %v925 = vmul.f32 %v747, %v893
        %v926 = vmul.f32 %v862, -0.00019515296
        %v927 = vmul.f32 %v863, -0.00019515296
        %v928 = vmul.f32 %v864, -0.00019515296
        %v929 = vmul.f32 %v865, -0.00019515296
        %v930 = vmul.f32 %v866, -0.00019515296
        %v931 = vmul.f32 %v867, -0.00019515296
        %v932 = vmul.f32 %v868, -0.00019515296
        %v933 = vmul.f32 %v869, -0.00019515296
        %v934 = vmul.f32 %v870, -0.00019515296
        %v935 = vmul.f32 %v871, -0.00019515296
        %v936 = vmul.f32 %v872, -0.00019515296
        %v937 = vmul.f32 %v873, -0.00019515296
        %v938 = vmul.f32 %v874, -0.00019515296
        %v939 = vmul.f32 %v875, -0.00019515296
        %v940 = vmul.f32 %v876, -0.00019515296
        %v941 = vmul.f32 %v877, -0.00019515296
        %v942 = vmul.f32 %v878, -0.00019515296
        %v943 = vmul.f32 %v879, -0.00019515296
        %v944 = vmul.f32 %v880, -0.00019515296
        %v945 = vmul.f32 %v881, -0.00019515296
        %v946 = vmul.f32 %v882, -0.00019515296
        %v947 = vmul.f32 %v883, -0.00019515296
        %v948 = vmul.f32 %v884, -0.00019515296
        %v949 = vmul.f32 %v885, -0.00019515296
        %v950 = vmul.f32 %v886, -0.00019515296
        %v951 = vmul.f32 %v887, -0.00019515296
        %v952 = vmul.f32 %v888, -0.00019515296
        %v953 = vmul.f32 %v889, -0.00019515296
        %v954 = vmul.f32 %v890, -0.00019515296
        %v955 = vmul.f32 %v891, -0.00019515296
        %v956 = vmul.f32 %v892, -0.00019515296
        %v957 = vmul.f32 %v893, -0.00019515296
        %v958 = vadd.f32 %v926, 0.008332161
        %v959 = vadd.f32 %v927, 0.008332161
        %v960 = vadd.f32 %v928, 0.008332161
        %v961 = vadd.f32 %v929, 0.008332161
        %v962 = vadd.f32 %v930, 0.008332161
        %v963 = vadd.f32 %v931, 0.008332161
        %v964 = vadd.f32 %v932, 0.008332161
        %v965 = vadd.f32 %v933, 0.008332161
        %v966 = vadd.f32 %v934, 0.008332161
        %v967 = vadd.f32 %v935, 0.008332161
        %v968 = vadd.f32 %v936, 0.008332161
        %v969 = vadd.f32 %v937, 0.008332161
        %v970 = vadd.f32 %v938, 0.008332161
        %v971 = vadd.f32 %v939, 0.008332161
        %v972 = vadd.f32 %v940, 0.008332161
        %v973 = vadd.f32 %v941, 0.008332161
        %v974 = vadd.f32 %v942, 0.008332161
        %v975 = vadd.f32 %v943, 0.008332161
        %v976 = vadd.f32 %v944, 0.008332161
        %v977 = vadd.f32 %v945, 0.008332161
        %v978 = vadd.f32 %v946, 0.008332161
        %v979 = vadd.f32 %v947, 0.008332161
        %v980 = vadd.f32 %v948, 0.008332161
        %v981 = vadd.f32 %v949, 0.008332161
        %v982 = vadd.f32 %v950, 0.008332161
        %v983 = vadd.f32 %v951, 0.008332161
        %v984 = vadd.f32 %v952, 0.008332161
        %v985 = vadd.f32 %v953, 0.008332161
        %v986 = vadd.f32 %v954, 0.008332161
        %v987 = vadd.f32 %v955, 0.008332161
        %v988 = vadd.f32 %v956, 0.008332161
        %v989 = vadd.f32 %v957, 0.008332161
        %v990 = vmul.f32 %v862, %v958
        %v991 = vmul.f32 %v863, %v959
        %v992 = vmul.f32 %v864, %v960
        %v993 = vmul.f32 %v865, %v961
        %v994 = vmul.f32 %v866, %v962
        %v995 = vmul.f32 %v867, %v963
        %v996 = vmul.f32 %v868, %v964
        %v997 = vmul.f32 %v869, %v965
        %v998 = vmul.f32 %v870, %v966
        %v999 = vmul.f32 %v871, %v967
        %v1000 = vmul.f32 %v872, %v968
        %v1001 = vmul.f32 %v873, %v969
        %v1002 = vmul.f32 %v874, %v970
        %v1003 = vmul.f32 %v875, %v971
        %v1004 = vmul.f32 %v876, %v972
        %v1005 = vmul.f32 %v877, %v973
        %v1006 = vmul.f32 %v878, %v974
        %v1007 = vmul.f32 %v879, %v975
        %v1008 = vmul.f32 %v880, %v976
        %v1009 = vmul.f32 %v881, %v977
        %v1010 = vmul.f32 %v882, %v978
        %v1011 = vmul.f32 %v883, %v979
        %v1012 = vmul.f32 %v884, %v980
        %v1013 = vmul.f32 %v885, %v981
        %v1014 = vmul.f32 %v886, %v982
        %v1015 = vmul.f32 %v887, %v983
        %v1016 = vmul.f32 %v888, %v984
        %v1017 = vmul.f32 %v889, %v985
        %v1018 = vmul.f32 %v890, %v986
        %v1019 = vmul.f32 %v891, %v987
        %v1020 = vmul.f32 %v892, %v988
        %v1021 = vmul.f32 %v893, %v989
        %v1022 = vadd.f32 %v990, -0.16666655
        %v1023 = vadd.f32 %v991, -0.16666655
        %v1024 = vadd.f32 %v992, -0.16666655
        %v1025 = vadd.f32 %v993, -0.16666655
        %v1026 = vadd.f32 %v994, -0.16666655
        %v1027 = vadd.f32 %v995, -0.16666655
        %v1028 = vadd.f32 %v996, -0.16666655
        %v1029 = vadd.f32 %v997, -0.16666655
        %v1030 = vadd.f32 %v998, -0.16666655
        %v1031 = vadd.f32 %v999, -0.16666655
        %v1032 = vadd.f32 %v1000, -0.16666655
        %v1033 = vadd.f32 %v1001, -0.16666655
        %v1034 = vadd.f32 %v1002, -0.16666655
        %v1035 = vadd.f32 %v1003, -0.16666655
        %v1036 = vadd.f32 %v1004, -0.16666655
        %v1037 = vadd.f32 %v1005, -0.16666655
        %v1038 = vadd.f32 %v1006, -0.16666655
        %v1039 = vadd.f32 %v1007, -0.16666655
        %v1040 = vadd.f32 %v1008, -0.16666655
        %v1041 = vadd.f32 %v1009, -0.16666655
        %v1042 = vadd.f32 %v1010, -0.16666655
        %v1043 = vadd.f32 %v1011, -0.16666655
        %v1044 = vadd.f32 %v1012, -0.16666655
        %v1045 = vadd.f32 %v1013, -0.16666655
        %v1046 = vadd.f32 %v1014, -0.16666655
        %v1047 = vadd.f32 %v1015, -0.16666655
        %v1048 = vadd.f32 %v1016, -0.16666655
        %v1049 = vadd.f32 %v1017, -0.16666655
        %v1050 = vadd.f32 %v1018, -0.16666655
        %v1051 = vadd.f32 %v1019, -0.16666655
        %v1052 = vadd.f32 %v1020, -0.16666655
        %v1053 = vadd.f32 %v1021, -0.16666655
        %v1054 = vmul.f32 %v894, %v1022
        %v1055 = vmul.f32 %v895, %v1023
        %v1056 = vmul.f32 %v896, %v1024
        %v1057 = vmul.f32 %v897, %v1025
        %v1058 = vmul.f32 %v898, %v1026
        %v1059 = vmul.f32 %v899, %v1027
        %v1060 = vmul.f32 %v900, %v1028
        %v1061 = vmul.f32 %v901, %v1029
        %v1062 = vmul.f32 %v902, %v1030
        %v1063 = vmul.f32 %v903, %v1031
        %v1064 = vmul.f32 %v904, %v1032
        %v1065 = vmul.f32 %v905, %v1033
        %v1066 = vmul.f32 %v906, %v1034
        %v1067 = vmul.f32 %v907, %v1035
        %v1068 = vmul.f32 %v908, %v1036
        %v1069 = vmul.f32 %v909, %v1037
        %v1070 = vmul.f32 %v910, %v1038
        %v1071 = vmul.f32 %v911, %v1039
        %v1072 = vmul.f32 %v912, %v1040
        %v1073 = vmul.f32 %v913, %v1041
        %v1074 = vmul.f32 %v914, %v1042
        %v1075 = vmul.f32 %v915, %v1043
        %v1076 = vmul.f32 %v916, %v1044
        %v1077 = vmul.f32 %v917, %v1045
        %v1078 = vmul.f32 %v918, %v1046
        %v1079 = vmul.f32 %v919, %v1047
        %v1080 = vmul.f32 %v920, %v1048
        %v1081 = vmul.f32 %v921, %v1049
        %v1082 = vmul.f32 %v922, %v1050
        %v1083 = vmul.f32 %v923, %v1051
        %v1084 = vmul.f32 %v924, %v1052
        %v1085 = vmul.f32 %v925, %v1053
        %v1086 = vadd.f32 %v716, %v1054
        %v1087 = vadd.f32 %v717, %v1055
        %v1088 = vadd.f32 %v718, %v1056
        %v1089 = vadd.f32 %v719, %v1057
        %v1090 = vadd.f32 %v720, %v1058
        %v1091 = vadd.f32 %v721, %v1059
        %v1092 = vadd.f32 %v722, %v1060
        %v1093 = vadd.f32 %v723, %v1061
        %v1094 = vadd.f32 %v724, %v1062
        %v1095 = vadd.f32 %v725, %v1063
        %v1096 = vadd.f32 %v726, %v1064
        %v1097 = vadd.f32 %v727, %v1065
        %v1098 = vadd.f32 %v728, %v1066
        %v1099 = vadd.f32 %v729, %v1067
        %v1100 = vadd.f32 %v730, %v1068
        %v1101 = vadd.f32 %v731, %v1069
        %v1102 = vadd.f32 %v732, %v1070
        %v1103 = vadd.f32 %v733, %v1071
        %v1104 = vadd.f32 %v734, %v1072
        %v1105 = vadd.f32 %v735, %v1073
        %v1106 = vadd.f32 %v736, %v1074
        %v1107 = vadd.f32 %v737, %v1075
        %v1108 = vadd.f32 %v738, %v1076
        %v1109 = vadd.f32 %v739, %v1077
        %v1110 = vadd.f32 %v740, %v1078
        %v1111 = vadd.f32 %v741, %v1079
        %v1112 = vadd.f32 %v742, %v1080
        %v1113 = vadd.f32 %v743, %v1081
        %v1114 = vadd.f32 %v744, %v1082
        %v1115 = vadd.f32 %v745, %v1083
        %v1116 = vadd.f32 %v746, %v1084
        %v1117 = vadd.f32 %v747, %v1085
        %v1118 = vmul.f32 %v862, 0.5
        %v1119 = vmul.f32 %v863, 0.5
        %v1120 = vmul.f32 %v864, 0.5
        %v1121 = vmul.f32 %v865, 0.5
        %v1122 = vmul.f32 %v866, 0.5
        %v1123 = vmul.f32 %v867, 0.5
        %v1124 = vmul.f32 %v868, 0.5
        %v1125 = vmul.f32 %v869, 0.5
        %v1126 = vmul.f32 %v870, 0.5
        %v1127 = vmul.f32 %v871, 0.5
        %v1128 = vmul.f32 %v872, 0.5
        %v1129 = vmul.f32 %v873, 0.5
        %v1130 = vmul.f32 %v874, 0.5
        %v1131 = vmul.f32 %v875, 0.5
        %v1132 = vmul.f32 %v876, 0.5
        %v1133 = vmul.f32 %v877, 0.5
        %v1134 = vmul.f32 %v878, 0.5
        %v1135 = vmul.f32 %v879, 0.5
        %v1136 = vmul.f32 %v880, 0.5
        %v1137 = vmul.f32 %v881, 0.5
        %v1138 = vmul.f32 %v882, 0.5
        %v1139 = vmul.f32 %v883, 0.5
        %v1140 = vmul.f32 %v884, 0.5
        %v1141 = vmul.f32 %v885, 0.5
        %v1142 = vmul.f32 %v886, 0.5
        %v1143 = vmul.f32 %v887, 0.5
        %v1144 = vmul.f32 %v888, 0.5
        %v1145 = vmul.f32 %v889, 0.5
        %v1146 = vmul.f32 %v890, 0.5
        %v1147 = vmul.f32 %v891, 0.5
        %v1148 = vmul.f32 %v892, 0.5
        %v1149 = vmul.f32 %v893, 0.5
        %v1150 = vsub.f32 1.0, %v1118
        %v1151 = vsub.f32 1.0, %v1119
        %v1152 = vsub.f32 1.0, %v1120
        %v1153 = vsub.f32 1.0, %v1121
        %v1154 = vsub.f32 1.0, %v1122
        %v1155 = vsub.f32 1.0, %v1123
        %v1156 = vsub.f32 1.0, %v1124
        %v1157 = vsub.f32 1.0, %v1125
        %v1158 = vsub.f32 1.0, %v1126
        %v1159 = vsub.f32 1.0, %v1127
        %v1160 = vsub.f32 1.0, %v1128
        %v1161 = vsub.f32 1.0, %v1129
        %v1162 = vsub.f32 1.0, %v1130
        %v1163 = vsub.f32 1.0, %v1131
        %v1164 = vsub.f32 1.0, %v1132
        %v1165 = vsub.f32 1.0, %v1133
        %v1166 = vsub.f32 1.0, %v1134
        %v1167 = vsub.f32 1.0, %v1135
        %v1168 = vsub.f32 1.0, %v1136
        %v1169 = vsub.f32 1.0, %v1137
        %v1170 = vsub.f32 1.0, %v1138
        %v1171 = vsub.f32 1.0, %v1139
        %v1172 = vsub.f32 1.0, %v1140
        %v1173 = vsub.f32 1.0, %v1141
        %v1174 = vsub.f32 1.0, %v1142
        %v1175 = vsub.f32 1.0, %v1143
        %v1176 = vsub.f32 1.0, %v1144
        %v1177 = vsub.f32 1.0, %v1145
        %v1178 = vsub.f32 1.0, %v1146
        %v1179 = vsub.f32 1.0, %v1147
        %v1180 = vsub.f32 1.0, %v1148
        %v1181 = vsub.f32 1.0, %v1149
        %v1182 = vmul.f32 %v862, %v862
        %v1183 = vmul.f32 %v863, %v863
        %v1184 = vmul.f32 %v864, %v864
        %v1185 = vmul.f32 %v865, %v865
        %v1186 = vmul.f32 %v866, %v866
        %v1187 = vmul.f32 %v867, %v867
        %v1188 = vmul.f32 %v868, %v868
        %v1189 = vmul.f32 %v869, %v869
        %v1190 = vmul.f32 %v870, %v870
        %v1191 = vmul.f32 %v871, %v871
        %v1192 = vmul.f32 %v872, %v872
        %v1193 = vmul.f32 %v873, %v873
        %v1194 = vmul.f32 %v874, %v874
        %v1195 = vmul.f32 %v875, %v875
        %v1196 = vmul.f32 %v876, %v876
        %v1197 = vmul.f32 %v877, %v877
        %v1198 = vmul.f32 %v878, %v878
        %v1199 = vmul.f32 %v879, %v879
        %v1200 = vmul.f32 %v880, %v880
        %v1201 = vmul.f32 %v881, %v881
        %v1202 = vmul.f32 %v882, %v882
        %v1203 = vmul.f32 %v883, %v883
        %v1204 = vmul.f32 %v884, %v884
        %v1205 = vmul.f32 %v885, %v885
        %v1206 = vmul.f32 %v886, %v886
        %v1207 = vmul.f32 %v887, %v887
        %v1208 = vmul.f32 %v888, %v888
        %v1209 = vmul.f32 %v889, %v889
        %v1210 = vmul.f32 %v890, %v890
        %v1211 = vmul.f32 %v891, %v891
        %v1212 = vmul.f32 %v892, %v892
        %v1213 = vmul.f32 %v893, %v893
        %v1214 = vmul.f32 %v862, 2.4433157e-05
        %v1215 = vmul.f32 %v863, 2.4433157e-05
        %v1216 = vmul.f32 %v864, 2.4433157e-05
        %v1217 = vmul.f32 %v865, 2.4433157e-05
        %v1218 = vmul.f32 %v866, 2.4433157e-05
        %v1219 = vmul.f32 %v867, 2.4433157e-05
        %v1220 = vmul.f32 %v868, 2.4433157e-05
        %v1221 = vmul.f32 %v869, 2.4433157e-05
        %v1222 = vmul.f32 %v870, 2.4433157e-05
        %v1223 = vmul.f32 %v871, 2.4433157e-05
        %v1224 = vmul.f32 %v872, 2.4433157e-05
        %v1225 = vmul.f32 %v873, 2.4433157e-05
        %v1226 = vmul.f32 %v874, 2.4433157e-05
        %v1227 = vmul.f32 %v875, 2.4433157e-05
        %v1228 = vmul.f32 %v876, 2.4433157e-05
        %v1229 = vmul.f32 %v877, 2.4433157e-05
        %v1230 = vmul.f32 %v878, 2.4433157e-05
        %v1231 = vmul.f32 %v879, 2.4433157e-05
        %v1232 = vmul.f32 %v880, 2.4433157e-05
        %v1233 = vmul.f32 %v881, 2.4433157e-05
        %v1234 = vmul.f32 %v882, 2.4433157e-05
        %v1235 = vmul.f32 %v883, 2.4433157e-05
        %v1236 = vmul.f32 %v884, 2.4433157e-05
        %v1237 = vmul.f32 %v885, 2.4433157e-05
        %v1238 = vmul.f32 %v886, 2.4433157e-05
        %v1239 = vmul.f32 %v887, 2.4433157e-05
        %v1240 = vmul.f32 %v888, 2.4433157e-05
        %v1241 = vmul.f32 %v889, 2.4433157e-05
        %v1242 = vmul.f32 %v890, 2.4433157e-05
        %v1243 = vmul.f32 %v891, 2.4433157e-05
        %v1244 = vmul.f32 %v892, 2.4433157e-05
        %v1245 = vmul.f32 %v893, 2.4433157e-05
        %v1246 = vadd.f32 %v1214, -0.0013887316
        %v1247 = vadd.f32 %v1215, -0.0013887316
        %v1248 = vadd.f32 %v1216, -0.0013887316
        %v1249 = vadd.f32 %v1217, -0.0013887316
        %v1250 = vadd.f32 %v1218, -0.0013887316
        %v1251 = vadd.f32 %v1219, -0.0013887316
        %v1252 = vadd.f32 %v1220, -0.0013887316
        %v1253 = vadd.f32 %v1221, -0.0013887316
        %v1254 = vadd.f32 %v1222, -0.0013887316
        %v1255 = vadd.f32 %v1223, -0.0013887316
        %v1256 = vadd.f32 %v1224, -0.0013887316
        %v1257 = vadd.f32 %v1225, -0.0013887316
        %v1258 = vadd.f32 %v1226, -0.0013887316
        %v1259 = vadd.f32 %v1227, -0.0013887316
        %v1260 = vadd.f32 %v1228, -0.0013887316
        %v1261 = vadd.f32 %v1229, -0.0013887316
        %v1262 = vadd.f32 %v1230, -0.0013887316
        %v1263 = vadd.f32 %v1231, -0.0013887316
        %v1264 = vadd.f32 %v1232, -0.0013887316
        %v1265 = vadd.f32 %v1233, -0.0013887316
        %v1266 = vadd.f32 %v1234, -0.0013887316
        %v1267 = vadd.f32 %v1235, -0.0013887316
        %v1268 = vadd.f32 %v1236, -0.0013887316
        %v1269 = vadd.f32 %v1237, -0.0013887316
        %v1270 = vadd.f32 %v1238, -0.0013887316
        %v1271 = vadd.f32 %v1239, -0.0013887316
        %v1272 = vadd.f32 %v1240, -0.0013887316
        %v1273 = vadd.f32 %v1241, -0.0013887316
        %v1274 = vadd.f32 %v1242, -0.0013887316
        %v1275 = vadd.f32 %v1243, -0.0013887316
        %v1276 = vadd.f32 %v1244, -0.0013887316
        %v1277 = vadd.f32 %v1245, -0.0013887316
        %v1278 = vmul.f32 %v862, %v1246
        %v1279 = vmul.f32 %v863, %v1247
        %v1280 = vmul.f32 %v864, %v1248
        %v1281 = vmul.f32 %v865, %v1249
        %v1282 = vmul.f32 %v866, %v1250
        %v1283 = vmul.f32 %v867, %v1251
        %v1284 = vmul.f32 %v868, %v1252
        %v1285 = vmul.f32 %v869, %v1253
        %v1286 = vmul.f32 %v870, %v1254
        %v1287 = vmul.f32 %v871, %v1255
        %v1288 = vmul.f32 %v872, %v1256
        %v1289 = vmul.f32 %v873, %v1257
        %v1290 = vmul.f32 %v874, %v1258
        %v1291 = vmul.f32 %v875, %v1259
        %v1292 = vmul.f32 %v876, %v1260
        %v1293 = vmul.f32 %v877, %v1261
        %v1294 = vmul.f32 %v878, %v1262
        %v1295 = vmul.f32 %v879, %v1263
        %v1296 = vmul.f32 %v880, %v1264
        %v1297 = vmul.f32 %v881, %v1265
        %v1298 = vmul.f32 %v882, %v1266
        %v1299 = vmul.f32 %v883, %v1267
        %v1300 = vmul.f32 %v884, %v1268
        %v1301 = vmul.f32 %v885, %v1269
        %v1302 = vmul.f32 %v886, %v1270
        %v1303 = vmul.f32 %v887, %v1271
        %v1304 = vmul.f32 %v888, %v1272
        %v1305 = vmul.f32 %v889, %v1273
        %v1306 = vmul.f32 %v890, %v1274
        %v1307 = vmul.f32 %v891, %v1275
        %v1308 = vmul.f32 %v892, %v1276
        %v1309 = vmul.f32 %v893, %v1277
        %v1310 = vadd.f32 %v1278, 0.041666646
        %v1311 = vadd.f32 %v1279, 0.041666646
        %v1312 = vadd.f32 %v1280, 0.041666646
        %v1313 = vadd.f32 %v1281, 0.041666646
        %v1314 = vadd.f32 %v1282, 0.041666646
        %v1315 = vadd.f32 %v1283, 0.041666646
        %v1316 = vadd.f32 %v1284, 0.041666646
        %v1317 = vadd.f32 %v1285, 0.041666646
        %v1318 = vadd.f32 %v1286, 0.041666646
        %v1319 = vadd.f32 %v1287, 0.041666646
        %v1320 = vadd.f32 %v1288, 0.041666646
        %v1321 = vadd.f32 %v1289, 0.041666646
        %v1322 = vadd.f32 %v1290, 0.041666646
        %v1323 = vadd.f32 %v1291, 0.041666646
        %v1324 = vadd.f32 %v1292, 0.041666646
        %v1325 = vadd.f32 %v1293, 0.041666646
        %v1326 = vadd.f32 %v1294, 0.041666646
        %v1327 = vadd.f32 %v1295, 0.041666646
        %v1328 = vadd.f32 %v1296, 0.041666646
        %v1329 = vadd.f32 %v1297, 0.041666646
        %v1330 = vadd.f32 %v1298, 0.041666646
        %v1331 = vadd.f32 %v1299, 0.041666646
        %v1332 = vadd.f32 %v1300, 0.041666646
        %v1333 = vadd.f32 %v1301, 0.041666646
        %v1334 = vadd.f32 %v1302, 0.041666646
        %v1335 = vadd.f32 %v1303, 0.041666646
        %v1336 = vadd.f32 %v1304, 0.041666646
        %v1337 = vadd.f32 %v1305, 0.041666646
        %v1338 = vadd.f32 %v1306, 0.041666646
        %v1339 = vadd.f32 %v1307, 0.041666646
        %v1340 = vadd.f32 %v1308, 0.041666646
        %v1341 = vadd.f32 %v1309, 0.041666646
        %v1342 = vmul.f32 %v1182, %v1310
        %v1343 = vmul.f32 %v1183, %v1311
        %v1344 = vmul.f32 %v1184, %v1312
        %v1345 = vmul.f32 %v1185, %v1313
        %v1346 = vmul.f32 %v1186, %v1314
        %v1347 = vmul.f32 %v1187, %v1315
        %v1348 = vmul.f32 %v1188, %v1316
        %v1349 = vmul.f32 %v1189, %v1317
        %v1350 = vmul.f32 %v1190, %v1318
        %v1351 = vmul.f32 %v1191, %v1319
        %v1352 = vmul.f32 %v1192, %v1320
        %v1353 = vmul.f32 %v1193, %v1321
        %v1354 = vmul.f32 %v1194, %v1322
        %v1355 = vmul.f32 %v1195, %v1323
        %v1356 = vmul.f32 %v1196, %v1324
        %v1357 = vmul.f32 %v1197, %v1325
        %v1358 = vmul.f32 %v1198, %v1326
        %v1359 = vmul.f32 %v1199, %v1327
        %v1360 = vmul.f32 %v1200, %v1328
        %v1361 = vmul.f32 %v1201, %v1329
        %v1362 = vmul.f32 %v1202, %v1330
        %v1363 = vmul.f32 %v1203, %v1331
        %v1364 = vmul.f32 %v1204, %v1332
        %v1365 = vmul.f32 %v1205, %v1333
        %v1366 = vmul.f32 %v1206, %v1334
        %v1367 = vmul.f32 %v1207, %v1335
        %v1368 = vmul.f32 %v1208, %v1336
        %v1369 = vmul.f32 %v1209, %v1337
        %v1370 = vmul.f32 %v1210, %v1338
        %v1371 = vmul.f32 %v1211, %v1339
        %v1372 = vmul.f32 %v1212, %v1340
        %v1373 = vmul.f32 %v1213, %v1341
        %v1374 = vadd.f32 %v1150, %v1342
        %v1375 = vadd.f32 %v1151, %v1343
        %v1376 = vadd.f32 %v1152, %v1344
        %v1377 = vadd.f32 %v1153, %v1345
        %v1378 = vadd.f32 %v1154, %v1346
        %v1379 = vadd.f32 %v1155, %v1347
        %v1380 = vadd.f32 %v1156, %v1348
        %v1381 = vadd.f32 %v1157, %v1349
        %v1382 = vadd.f32 %v1158, %v1350
        %v1383 = vadd.f32 %v1159, %v1351
        %v1384 = vadd.f32 %v1160, %v1352
        %v1385 = vadd.f32 %v1161, %v1353
        %v1386 = vadd.f32 %v1162, %v1354
        %v1387 = vadd.f32 %v1163, %v1355
        %v1388 = vadd.f32 %v1164, %v1356
        %v1389 = vadd.f32 %v1165, %v1357
        %v1390 = vadd.f32 %v1166, %v1358
        %v1391 = vadd.f32 %v1167, %v1359
        %v1392 = vadd.f32 %v1168, %v1360
        %v1393 = vadd.f32 %v1169, %v1361
        %v1394 = vadd.f32 %v1170, %v1362
        %v1395 = vadd.f32 %v1171, %v1363
        %v1396 = vadd.f32 %v1172, %v1364
        %v1397 = vadd.f32 %v1173, %v1365
        %v1398 = vadd.f32 %v1174, %v1366
        %v1399 = vadd.f32 %v1175, %v1367
        %v1400 = vadd.f32 %v1176, %v1368
        %v1401 = vadd.f32 %v1177, %v1369
        %v1402 = vadd.f32 %v1178, %v1370
        %v1403 = vadd.f32 %v1179, %v1371
        %v1404 = vadd.f32 %v1180, %v1372
        %v1405 = vadd.f32 %v1181, %v1373
        %v1406 = vand.u32 %v830, 1
        %v1407 = vand.u32 %v831, 1
        %v1408 = vand.u32 %v832, 1
        %v1409 = vand.u32 %v833, 1
        %v1410 = vand.u32 %v834, 1
        %v1411 = vand.u32 %v835, 1
        %v1412 = vand.u32 %v836, 1
        %v1413 = vand.u32 %v837, 1
        %v1414 = vand.u32 %v838, 1
        %v1415 = vand.u32 %v839, 1
        %v1416 = vand.u32 %v840, 1
        %v1417 = vand.u32 %v841, 1
        %v1418 = vand.u32 %v842, 1
        %v1419 = vand.u32 %v843, 1
        %v1420 = vand.u32 %v844, 1
        %v1421 = vand.u32 %v845, 1
        %v1422 = vand.u32 %v846, 1
        %v1423 = vand.u32 %v847, 1
        %v1424 = vand.u32 %v848, 1
        %v1425 = vand.u32 %v849, 1
        %v1426 = vand.u32 %v850, 1
        %v1427 = vand.u32 %v851, 1
        %v1428 = vand.u32 %v852, 1
        %v1429 = vand.u32 %v853, 1
        %v1430 = vand.u32 %v854, 1
        %v1431 = vand.u32 %v855, 1
        %v1432 = vand.u32 %v856, 1
        %v1433 = vand.u32 %v857, 1
        %v1434 = vand.u32 %v858, 1
        %v1435 = vand.u32 %v859, 1
        %v1436 = vand.u32 %v860, 1
        %v1437 = vand.u32 %v861, 1
        %vm1438 = vcmp.eq.s32.totalorder %v1406, 1
        %vm1439 = vcmp.eq.s32.totalorder %v1407, 1
        %vm1440 = vcmp.eq.s32.totalorder %v1408, 1
        %vm1441 = vcmp.eq.s32.totalorder %v1409, 1
        %vm1442 = vcmp.eq.s32.totalorder %v1410, 1
        %vm1443 = vcmp.eq.s32.totalorder %v1411, 1
        %vm1444 = vcmp.eq.s32.totalorder %v1412, 1
        %vm1445 = vcmp.eq.s32.totalorder %v1413, 1
        %vm1446 = vcmp.eq.s32.totalorder %v1414, 1
        %vm1447 = vcmp.eq.s32.totalorder %v1415, 1
        %vm1448 = vcmp.eq.s32.totalorder %v1416, 1
        %vm1449 = vcmp.eq.s32.totalorder %v1417, 1
        %vm1450 = vcmp.eq.s32.totalorder %v1418, 1
        %vm1451 = vcmp.eq.s32.totalorder %v1419, 1
        %vm1452 = vcmp.eq.s32.totalorder %v1420, 1
        %vm1453 = vcmp.eq.s32.totalorder %v1421, 1
        %vm1454 = vcmp.eq.s32.totalorder %v1422, 1
        %vm1455 = vcmp.eq.s32.totalorder %v1423, 1
        %vm1456 = vcmp.eq.s32.totalorder %v1424, 1
        %vm1457 = vcmp.eq.s32.totalorder %v1425, 1
        %vm1458 = vcmp.eq.s32.totalorder %v1426, 1
        %vm1459 = vcmp.eq.s32.totalorder %v1427, 1
        %vm1460 = vcmp.eq.s32.totalorder %v1428, 1
        %vm1461 = vcmp.eq.s32.totalorder %v1429, 1
        %vm1462 = vcmp.eq.s32.totalorder %v1430, 1
        %vm1463 = vcmp.eq.s32.totalorder %v1431, 1
        %vm1464 = vcmp.eq.s32.totalorder %v1432, 1
        %vm1465 = vcmp.eq.s32.totalorder %v1433, 1
        %vm1466 = vcmp.eq.s32.totalorder %v1434, 1
        %vm1467 = vcmp.eq.s32.totalorder %v1435, 1
        %vm1468 = vcmp.eq.s32.totalorder %v1436, 1
        %vm1469 = vcmp.eq.s32.totalorder %v1437, 1
        %v1470 = vsel %vm1438, %v1374, %v1086
        %v1471 = vsel %vm1439, %v1375, %v1087
        %v1472 = vsel %vm1440, %v1376, %v1088
        %v1473 = vsel %vm1441, %v1377, %v1089
        %v1474 = vsel %vm1442, %v1378, %v1090
        %v1475 = vsel %vm1443, %v1379, %v1091
        %v1476 = vsel %vm1444, %v1380, %v1092
        %v1477 = vsel %vm1445, %v1381, %v1093
        %v1478 = vsel %vm1446, %v1382, %v1094
        %v1479 = vsel %vm1447, %v1383, %v1095
        %v1480 = vsel %vm1448, %v1384, %v1096
        %v1481 = vsel %vm1449, %v1385, %v1097
        %v1482 = vsel %vm1450, %v1386, %v1098
        %v1483 = vsel %vm1451, %v1387, %v1099
        %v1484 = vsel %vm1452, %v1388, %v1100
        %v1485 = vsel %vm1453, %v1389, %v1101
        %v1486 = vsel %vm1454, %v1390, %v1102
        %v1487 = vsel %vm1455, %v1391, %v1103
        %v1488 = vsel %vm1456, %v1392, %v1104
        %v1489 = vsel %vm1457, %v1393, %v1105
        %v1490 = vsel %vm1458, %v1394, %v1106
        %v1491 = vsel %vm1459, %v1395, %v1107
        %v1492 = vsel %vm1460, %v1396, %v1108
        %v1493 = vsel %vm1461, %v1397, %v1109
        %v1494 = vsel %vm1462, %v1398, %v1110
        %v1495 = vsel %vm1463, %v1399, %v1111
        %v1496 = vsel %vm1464, %v1400, %v1112
        %v1497 = vsel %vm1465, %v1401, %v1113
        %v1498 = vsel %vm1466, %v1402, %v1114
        %v1499 = vsel %vm1467, %v1403, %v1115
        %v1500 = vsel %vm1468, %v1404, %v1116
        %v1501 = vsel %vm1469, %v1405, %v1117
        %v1502 = vand.u32 %v830, 2
        %v1503 = vand.u32 %v831, 2
        %v1504 = vand.u32 %v832, 2
        %v1505 = vand.u32 %v833, 2
        %v1506 = vand.u32 %v834, 2
        %v1507 = vand.u32 %v835, 2
        %v1508 = vand.u32 %v836, 2
        %v1509 = vand.u32 %v837, 2
        %v1510 = vand.u32 %v838, 2
        %v1511 = vand.u32 %v839, 2
        %v1512 = vand.u32 %v840, 2
        %v1513 = vand.u32 %v841, 2
        %v1514 = vand.u32 %v842, 2
        %v1515 = vand.u32 %v843, 2
        %v1516 = vand.u32 %v844, 2
        %v1517 = vand.u32 %v845, 2
        %v1518 = vand.u32 %v846, 2
        %v1519 = vand.u32 %v847, 2
        %v1520 = vand.u32 %v848, 2
        %v1521 = vand.u32 %v849, 2
        %v1522 = vand.u32 %v850, 2
        %v1523 = vand.u32 %v851, 2
        %v1524 = vand.u32 %v852, 2
        %v1525 = vand.u32 %v853, 2
        %v1526 = vand.u32 %v854, 2
        %v1527 = vand.u32 %v855, 2
        %v1528 = vand.u32 %v856, 2
        %v1529 = vand.u32 %v857, 2
        %v1530 = vand.u32 %v858, 2
        %v1531 = vand.u32 %v859, 2
        %v1532 = vand.u32 %v860, 2
        %v1533 = vand.u32 %v861, 2
        %vm1534 = vcmp.ne.s32.totalorder %v1502, 0
        %vm1535 = vcmp.ne.s32.totalorder %v1503, 0
        %vm1536 = vcmp.ne.s32.totalorder %v1504, 0
        %vm1537 = vcmp.ne.s32.totalorder %v1505, 0
        %vm1538 = vcmp.ne.s32.totalorder %v1506, 0
        %vm1539 = vcmp.ne.s32.totalorder %v1507, 0
        %vm1540 = vcmp.ne.s32.totalorder %v1508, 0
        %vm1541 = vcmp.ne.s32.totalorder %v1509, 0
        %vm1542 = vcmp.ne.s32.totalorder %v1510, 0
        %vm1543 = vcmp.ne.s32.totalorder %v1511, 0
        %vm1544 = vcmp.ne.s32.totalorder %v1512, 0
        %vm1545 = vcmp.ne.s32.totalorder %v1513, 0
        %vm1546 = vcmp.ne.s32.totalorder %v1514, 0
        %vm1547 = vcmp.ne.s32.totalorder %v1515, 0
        %vm1548 = vcmp.ne.s32.totalorder %v1516, 0
        %vm1549 = vcmp.ne.s32.totalorder %v1517, 0
        %vm1550 = vcmp.ne.s32.totalorder %v1518, 0
        %vm1551 = vcmp.ne.s32.totalorder %v1519, 0
        %vm1552 = vcmp.ne.s32.totalorder %v1520, 0
        %vm1553 = vcmp.ne.s32.totalorder %v1521, 0
        %vm1554 = vcmp.ne.s32.totalorder %v1522, 0
        %vm1555 = vcmp.ne.s32.totalorder %v1523, 0
        %vm1556 = vcmp.ne.s32.totalorder %v1524, 0
        %vm1557 = vcmp.ne.s32.totalorder %v1525, 0
        %vm1558 = vcmp.ne.s32.totalorder %v1526, 0
        %vm1559 = vcmp.ne.s32.totalorder %v1527, 0
        %vm1560 = vcmp.ne.s32.totalorder %v1528, 0
        %vm1561 = vcmp.ne.s32.totalorder %v1529, 0
        %vm1562 = vcmp.ne.s32.totalorder %v1530, 0
        %vm1563 = vcmp.ne.s32.totalorder %v1531, 0
        %vm1564 = vcmp.ne.s32.totalorder %v1532, 0
        %vm1565 = vcmp.ne.s32.totalorder %v1533, 0
        %v1566 = vsub.f32 0.0, %v1470
        %v1567 = vsub.f32 0.0, %v1471
        %v1568 = vsub.f32 0.0, %v1472
        %v1569 = vsub.f32 0.0, %v1473
        %v1570 = vsub.f32 0.0, %v1474
        %v1571 = vsub.f32 0.0, %v1475
        %v1572 = vsub.f32 0.0, %v1476
        %v1573 = vsub.f32 0.0, %v1477
        %v1574 = vsub.f32 0.0, %v1478
        %v1575 = vsub.f32 0.0, %v1479
        %v1576 = vsub.f32 0.0, %v1480
        %v1577 = vsub.f32 0.0, %v1481
        %v1578 = vsub.f32 0.0, %v1482
        %v1579 = vsub.f32 0.0, %v1483
        %v1580 = vsub.f32 0.0, %v1484
        %v1581 = vsub.f32 0.0, %v1485
        %v1582 = vsub.f32 0.0, %v1486
        %v1583 = vsub.f32 0.0, %v1487
        %v1584 = vsub.f32 0.0, %v1488
        %v1585 = vsub.f32 0.0, %v1489
        %v1586 = vsub.f32 0.0, %v1490
        %v1587 = vsub.f32 0.0, %v1491
        %v1588 = vsub.f32 0.0, %v1492
        %v1589 = vsub.f32 0.0, %v1493
        %v1590 = vsub.f32 0.0, %v1494
        %v1591 = vsub.f32 0.0, %v1495
        %v1592 = vsub.f32 0.0, %v1496
        %v1593 = vsub.f32 0.0, %v1497
        %v1594 = vsub.f32 0.0, %v1498
        %v1595 = vsub.f32 0.0, %v1499
        %v1596 = vsub.f32 0.0, %v1500
        %v1597 = vsub.f32 0.0, %v1501
        %v1598 = vsel %vm1534, %v1566, %v1470
        %v1599 = vsel %vm1535, %v1567, %v1471
        %v1600 = vsel %vm1536, %v1568, %v1472
        %v1601 = vsel %vm1537, %v1569, %v1473
        %v1602 = vsel %vm1538, %v1570, %v1474
        %v1603 = vsel %vm1539, %v1571, %v1475
        %v1604 = vsel %vm1540, %v1572, %v1476
        %v1605 = vsel %vm1541, %v1573, %v1477
        %v1606 = vsel %vm1542, %v1574, %v1478
        %v1607 = vsel %vm1543, %v1575, %v1479
        %v1608 = vsel %vm1544, %v1576, %v1480
        %v1609 = vsel %vm1545, %v1577, %v1481
        %v1610 = vsel %vm1546, %v1578, %v1482
        %v1611 = vsel %vm1547, %v1579, %v1483
        %v1612 = vsel %vm1548, %v1580, %v1484
        %v1613 = vsel %vm1549, %v1581, %v1485
        %v1614 = vsel %vm1550, %v1582, %v1486
        %v1615 = vsel %vm1551, %v1583, %v1487
        %v1616 = vsel %vm1552, %v1584, %v1488
        %v1617 = vsel %vm1553, %v1585, %v1489
        %v1618 = vsel %vm1554, %v1586, %v1490
        %v1619 = vsel %vm1555, %v1587, %v1491
        %v1620 = vsel %vm1556, %v1588, %v1492
        %v1621 = vsel %vm1557, %v1589, %v1493
        %v1622 = vsel %vm1558, %v1590, %v1494
        %v1623 = vsel %vm1559, %v1591, %v1495
        %v1624 = vsel %vm1560, %v1592, %v1496
        %v1625 = vsel %vm1561, %v1593, %v1497
        %v1626 = vsel %vm1562, %v1594, %v1498
        %v1627 = vsel %vm1563, %v1595, %v1499
        %v1628 = vsel %vm1564, %v1596, %v1500
        %v1629 = vsel %vm1565, %v1597, %v1501
        %1630 = vst [vmem:[%s145] sm:$0xff] %v1598
        %vm1631 = vcmask 588800
        %1632 = vst.msk [vmem:[%s145 + $0x8] sm:$0xff] %vm1631, %v1599
        %1633 = vst [vmem:[%s145 + $0x10] sm:$0xff] %v1600
        %1634 = vst.msk [vmem:[%s145 + $0x18] sm:$0xff] %vm1631, %v1601
        %1635 = vst [vmem:[%s145 + $0x20] sm:$0xff] %v1602
        %1636 = vst.msk [vmem:[%s145 + $0x28] sm:$0xff] %vm1631, %v1603
        %1637 = vst [vmem:[%s145 + $0x30] sm:$0xff] %v1604
        %1638 = vst.msk [vmem:[%s145 + $0x38] sm:$0xff] %vm1631, %v1605
        %1639 = vst [vmem:[%s145 + $0x40] sm:$0xff] %v1606
        %1640 = vst.msk [vmem:[%s145 + $0x48] sm:$0xff] %vm1631, %v1607
        %1641 = vst [vmem:[%s145 + $0x50] sm:$0xff] %v1608
        %1642 = vst.msk [vmem:[%s145 + $0x58] sm:$0xff] %vm1631, %v1609
        %1643 = vst [vmem:[%s145 + $0x60] sm:$0xff] %v1610
        %1644 = vst.msk [vmem:[%s145 + $0x68] sm:$0xff] %vm1631, %v1611
        %1645 = vst [vmem:[%s145 + $0x70] sm:$0xff] %v1612
        %1646 = vst.msk [vmem:[%s145 + $0x78] sm:$0xff] %vm1631, %v1613
        %1647 = vst [vmem:[%s145 + $0x80] sm:$0xff] %v1614
        %1648 = vst.msk [vmem:[%s145 + $0x88] sm:$0xff] %vm1631, %v1615
        %1649 = vst [vmem:[%s145 + $0x90] sm:$0xff] %v1616
        %1650 = vst.msk [vmem:[%s145 + $0x98] sm:$0xff] %vm1631, %v1617
        %1651 = vst [vmem:[%s145 + $0xa0] sm:$0xff] %v1618
        %1652 = vst.msk [vmem:[%s145 + $0xa8] sm:$0xff] %vm1631, %v1619
        %1653 = vst [vmem:[%s145 + $0xb0] sm:$0xff] %v1620
        %1654 = vst.msk [vmem:[%s145 + $0xb8] sm:$0xff] %vm1631, %v1621
        %1655 = vst [vmem:[%s145 + $0xc0] sm:$0xff] %v1622
        %1656 = vst.msk [vmem:[%s145 + $0xc8] sm:$0xff] %vm1631, %v1623
        %1657 = vst [vmem:[%s145 + $0xd0] sm:$0xff] %v1624
        %1658 = vst.msk [vmem:[%s145 + $0xd8] sm:$0xff] %vm1631, %v1625
        %1659 = vst [vmem:[%s145 + $0xe0] sm:$0xff] %v1626
        %1660 = vst.msk [vmem:[%s145 + $0xe8] sm:$0xff] %vm1631, %v1627
        %1661 = vst [vmem:[%s145 + $0xf0] sm:$0xff] %v1628
        %1662 = vst.msk [vmem:[%s145 + $0xf8] sm:$0xff] %vm1631, %v1629
        %s1663 = sand.u32 %s68, 1
        %s1664 = sand.u32 %s68, 1
        %s1665 = smul.addr %s1664, 256
        %s1666 = scalar_lea.vmem [#allocation2], %s1665
        // Predicated region
        $region29: #{tpu_custom_call.1} parent=27 // pred_check
          %p1667 = pneg %p78
        $region30: #{tpu_custom_call.1} parent=27 // pred_check_branch
          %1669 = sbr.rel (%p1667) target = $region32
        $region31: #{tpu_custom_call.1} parent=27 // pred_region
          %s1670 = smul.u32 16, %s13
          %s1671 = ssub.s32 38, %s1670
          %p1672 = scmp.lt.s32.totalorder %s1671, 16
          %s1673 = scalar_select %p1672, %s1671, 16
          %s1674 = smul.u32 128, %s1673
          %s1675 = smul.u32 %s1674, 2
          %p1676 = scmp.ne.s32.totalorder 0, %s1675
          %s1677 = smul.addr %s1670, 2
          %s1678 = smul.addr %s1677, 8
          %s1679 = scalar_lea.vmem %s2, %s1678
          // Predicated region
          $region33: #{tpu_custom_call.1} parent=31 // pred_check
            %p1680 = pneg %p1676
          $region34: #{tpu_custom_call.1} parent=31 // pred_check_branch
            %1682 = sbr.rel (%p1680) target = $region36
          $region35: #{tpu_custom_call.1} parent=31 // pred_region
            // Predicated region
            $region37: #{tpu_custom_call.1} parent=35 // pred_check
              _
            $region38: #{tpu_custom_call.1} parent=35 // pred_check_branch
              %1684 = sbr.rel (0) target = $region40
            $region39: #{tpu_custom_call.1} parent=35 // pred_region
              %s1685 = sshrl.u32 %s1673, 4
              // While loop
              $region41: #{tpu_custom_call.1} parent=39 // loop_pre_header
                _
              $region42: #{tpu_custom_call.1} parent=39 // loop_header
                %s1687 = sphi 0, %s1689
                %p1688 = scmp.ge.s32.totalorder %s1687, %s1685
                %s1692 = sphi 0, %s1761
                %s1693 = sphi %s1666, %s1764
                %s1694 = sphi %s1679, %s1765
              $region43: #{tpu_custom_call.1} parent=39 // loop_header_branch
                %1691 = sbr.rel (%p1688) target = $region47
              $region44: #{tpu_custom_call.1} parent=39 // loop_body
                %v1695 = vld [vmem:[%s1693] sm:$0xff]
                %1696 = vst [vmem:[%s1694] sm:$0xff] %v1695
                %v1697 = vld [vmem:[%s1693 + $0x10] sm:$0xff]
                %1698 = vst [vmem:[%s1694 + $0x10] sm:$0xff] %v1697
                %v1699 = vld [vmem:[%s1693 + $0x20] sm:$0xff]
                %1700 = vst [vmem:[%s1694 + $0x20] sm:$0xff] %v1699
                %v1701 = vld [vmem:[%s1693 + $0x30] sm:$0xff]
                %1702 = vst [vmem:[%s1694 + $0x30] sm:$0xff] %v1701
                %v1703 = vld [vmem:[%s1693 + $0x40] sm:$0xff]
                %1704 = vst [vmem:[%s1694 + $0x40] sm:$0xff] %v1703
                %v1705 = vld [vmem:[%s1693 + $0x50] sm:$0xff]
                %1706 = vst [vmem:[%s1694 + $0x50] sm:$0xff] %v1705
                %v1707 = vld [vmem:[%s1693 + $0x60] sm:$0xff]
                %1708 = vst [vmem:[%s1694 + $0x60] sm:$0xff] %v1707
                %v1709 = vld [vmem:[%s1693 + $0x70] sm:$0xff]
                %1710 = vst [vmem:[%s1694 + $0x70] sm:$0xff] %v1709
                %v1711 = vld [vmem:[%s1693 + $0x80] sm:$0xff]
                %1712 = vst [vmem:[%s1694 + $0x80] sm:$0xff] %v1711
                %v1713 = vld [vmem:[%s1693 + $0x90] sm:$0xff]
                %1714 = vst [vmem:[%s1694 + $0x90] sm:$0xff] %v1713
                %v1715 = vld [vmem:[%s1693 + $0xa0] sm:$0xff]
                %1716 = vst [vmem:[%s1694 + $0xa0] sm:$0xff] %v1715
                %v1717 = vld [vmem:[%s1693 + $0xb0] sm:$0xff]
                %1718 = vst [vmem:[%s1694 + $0xb0] sm:$0xff] %v1717
                %v1719 = vld [vmem:[%s1693 + $0xc0] sm:$0xff]
                %1720 = vst [vmem:[%s1694 + $0xc0] sm:$0xff] %v1719
                %v1721 = vld [vmem:[%s1693 + $0xd0] sm:$0xff]
                %1722 = vst [vmem:[%s1694 + $0xd0] sm:$0xff] %v1721
                %v1723 = vld [vmem:[%s1693 + $0xe0] sm:$0xff]
                %1724 = vst [vmem:[%s1694 + $0xe0] sm:$0xff] %v1723
                %v1725 = vld [vmem:[%s1693 + $0xf0] sm:$0xff]
                %1726 = vst [vmem:[%s1694 + $0xf0] sm:$0xff] %v1725
                %v1727 = vld [vmem:[%s1693 + $0x8] sm:$0xff]
                %1728 = vst [vmem:[%s1694 + $0x8] sm:$0xff] %v1727
                %v1729 = vld [vmem:[%s1693 + $0x18] sm:$0xff]
                %1730 = vst [vmem:[%s1694 + $0x18] sm:$0xff] %v1729
                %v1731 = vld [vmem:[%s1693 + $0x28] sm:$0xff]
                %1732 = vst [vmem:[%s1694 + $0x28] sm:$0xff] %v1731
                %v1733 = vld [vmem:[%s1693 + $0x38] sm:$0xff]
                %1734 = vst [vmem:[%s1694 + $0x38] sm:$0xff] %v1733
                %v1735 = vld [vmem:[%s1693 + $0x48] sm:$0xff]
                %1736 = vst [vmem:[%s1694 + $0x48] sm:$0xff] %v1735
                %v1737 = vld [vmem:[%s1693 + $0x58] sm:$0xff]
                %1738 = vst [vmem:[%s1694 + $0x58] sm:$0xff] %v1737
                %v1739 = vld [vmem:[%s1693 + $0x68] sm:$0xff]
                %1740 = vst [vmem:[%s1694 + $0x68] sm:$0xff] %v1739
                %v1741 = vld [vmem:[%s1693 + $0x78] sm:$0xff]
                %1742 = vst [vmem:[%s1694 + $0x78] sm:$0xff] %v1741
                %v1743 = vld [vmem:[%s1693 + $0x88] sm:$0xff]
                %1744 = vst [vmem:[%s1694 + $0x88] sm:$0xff] %v1743
                %v1745 = vld [vmem:[%s1693 + $0x98] sm:$0xff]
                %1746 = vst [vmem:[%s1694 + $0x98] sm:$0xff] %v1745
                %v1747 = vld [vmem:[%s1693 + $0xa8] sm:$0xff]
                %1748 = vst [vmem:[%s1694 + $0xa8] sm:$0xff] %v1747
                %v1749 = vld [vmem:[%s1693 + $0xb8] sm:$0xff]
                %1750 = vst [vmem:[%s1694 + $0xb8] sm:$0xff] %v1749
                %v1751 = vld [vmem:[%s1693 + $0xc8] sm:$0xff]
                %1752 = vst [vmem:[%s1694 + $0xc8] sm:$0xff] %v1751
                %v1753 = vld [vmem:[%s1693 + $0xd8] sm:$0xff]
                %1754 = vst [vmem:[%s1694 + $0xd8] sm:$0xff] %v1753
                %v1755 = vld [vmem:[%s1693 + $0xe8] sm:$0xff]
                %1756 = vst [vmem:[%s1694 + $0xe8] sm:$0xff] %v1755
                %v1757 = vld [vmem:[%s1693 + $0xf8] sm:$0xff]
                %1758 = vst [vmem:[%s1694 + $0xf8] sm:$0xff] %v1757
                %s1759 = sadd.s32 1, %s1692
                %p1760 = scmp.ge.s32.totalorder %s1759, %s1685
                %s1761 = scalar_select %p1760, 0, %s1759
                %s1762 = smul.u32 %s1761, 256
                %s1763 = smul.u32 %s1761, 256
                %s1764 = scalar_lea.vmem %s1666, %s1762 [#allocation2]
                %s1765 = scalar_lea.vmem %s1679, %s1763
              $region45: #{tpu_custom_call.1} parent=39 // loop_footer
                %s1689 = sadd.s32 %s1687, 1
              $region46: #{tpu_custom_call.1} parent=39 // loop_footer_branch
                %1686 = sbr.rel target = $region42
              $region47: #{tpu_custom_call.1} parent=39 // loop_exit
                _
              %s1766 = sshrl.u32 %s1673, 4
              %s1767 = sand.u32 %s1673, 15
              %s1768 = smul.u32 %s1766, 16
              %s1769 = smul.u32 16, %s1768
              %s1770 = scalar_lea.vmem %s1666, %s1769 [#allocation2]
              %s1771 = smul.u32 16, %s1768
              %s1772 = scalar_lea.vmem %s1679, %s1771
              // While loop
              $region48: #{tpu_custom_call.1} parent=39 // loop_pre_header
                _
              $region49: #{tpu_custom_call.1} parent=39 // loop_header
                %s1774 = sphi 0, %s1776
                %p1775 = scmp.ge.s32.totalorder %s1774, %s1767
                %s1779 = sphi 0, %s1788
                %s1780 = sphi %s1770, %s1791
                %s1781 = sphi %s1772, %s1792
              $region50: #{tpu_custom_call.1} parent=39 // loop_header_branch
                %1778 = sbr.rel (%p1775) target = $region54
              $region51: #{tpu_custom_call.1} parent=39 // loop_body
                %v1782 = vld [vmem:[%s1780] sm:$0xff]
                %1783 = vst [vmem:[%s1781] sm:$0xff] %v1782
                %v1784 = vld [vmem:[%s1780 + $0x8] sm:$0xff]
                %1785 = vst [vmem:[%s1781 + $0x8] sm:$0xff] %v1784
                %s1786 = sadd.s32 1, %s1779
                %p1787 = scmp.ge.s32.totalorder %s1786, %s1767
                %s1788 = scalar_select %p1787, 0, %s1786
                %s1789 = smul.u32 %s1788, 16
                %s1790 = smul.u32 %s1788, 16
                %s1791 = scalar_lea.vmem %s1770, %s1789 [#allocation2]
                %s1792 = scalar_lea.vmem %s1772, %s1790
              $region52: #{tpu_custom_call.1} parent=39 // loop_footer
                %s1776 = sadd.s32 %s1774, 1
              $region53: #{tpu_custom_call.1} parent=39 // loop_footer_branch
                %1773 = sbr.rel target = $region49
              $region54: #{tpu_custom_call.1} parent=39 // loop_exit
                _
            $region40: #{tpu_custom_call.1} parent=35 // pred_fallthru
              _
            // Predicated region
            $region55: #{tpu_custom_call.1} parent=35 // pred_check
              _
            $region56: #{tpu_custom_call.1} parent=35 // pred_check_branch
              %1794 = sbr.rel target = $region58
            $region57: #{tpu_custom_call.1} parent=35 // pred_region
              _
            $region58: #{tpu_custom_call.1} parent=35 // pred_fallthru
              _
          $region36: #{tpu_custom_call.1} parent=31 // pred_fallthru
            _
          %1795 = vnop
        $region32: #{tpu_custom_call.1} parent=27 // pred_fallthru
          _
      $region28: #{tpu_custom_call.1} parent=5 // pred_fallthru
        _
      %p1796 = scmp.le.s32.totalorder 2, %s8
      // Predicated region
      $region59: #{tpu_custom_call.1} parent=5 // pred_check
        %p1797 = pneg %p1796
      $region60: #{tpu_custom_call.1} parent=5 // pred_check_branch
        %1799 = sbr.rel (%p1797) target = $region62
      $region61: #{tpu_custom_call.1} parent=5 // pred_region
        %s1800 = ssub.s32 %s8, 2
        // Predicated region
        $region63: #{tpu_custom_call.1} parent=61 // pred_check
          %p1801 = pneg %p84
        $region64: #{tpu_custom_call.1} parent=61 // pred_check_branch
          %1803 = sbr.rel (%p1801) target = $region66
        $region65: #{tpu_custom_call.1} parent=61 // pred_region
          %s1804 = sand.u32 %s69, 1
          %s1805 = sand.u32 %s69, 1
          %s1806 = smul.addr %s1805, 256
          %s1807 = scalar_lea.vmem [#allocation2], %s1806
        $region66: #{tpu_custom_call.1} parent=61 // pred_fallthru
          _
      $region62: #{tpu_custom_call.1} parent=5 // pred_fallthru
        _
    $region6: #{tpu_custom_call.1} parent=1 // loop_footer
      %s12 = sadd.s32 1, %s8
    $region7: #{tpu_custom_call.1} parent=1 // loop_footer_branch
      %7 = sbr.rel target = $region3
    $region8: #{tpu_custom_call.1} parent=1 // loop_exit
      _

</llo_original>
